<compile_context>
chip_gen: v6e
topology: v6e:2x2x1
jax: 0.10.0
libtpu: 0.0.40
codegen_flags: <defaults>
</compile_context>

<pallas_src>
import math
import functools

import jax
import jax.numpy as jnp
from jax.experimental import pallas as pl
from jax.experimental.pallas import tpu as pltpu


MATMUL_DTYPE = jnp.bfloat16   # MXU operand dtype; jnp.float32 for exact parity


# ----------------------------- in-kernel helpers -----------------------------

def _layer_norm(x, g, b, eps=1e-5):
    mu = jnp.mean(x, axis=-1, keepdims=True)
    var = jnp.mean((x - mu) ** 2, axis=-1, keepdims=True)
    return (x - mu) * jax.lax.rsqrt(var + eps) * g + b


def _erf_approx(x):
    # Abramowitz & Stegun 7.1.26 (|err| < 1.5e-7).  Uses only exp / mul / add /
    # select so it lowers cleanly in Mosaic (no reliance on a lax.erf rule).
    a1, a2, a3, a4, a5 = 0.254829592, -0.284496736, 1.421413741, -1.453152027, 1.061405429
    p = 0.3275911
    ax = jnp.where(x >= 0.0, x, -x)
    t = 1.0 / (1.0 + p * ax)
    poly = ((((a5 * t + a4) * t + a3) * t + a2) * t + a1) * t
    y = 1.0 - poly * jnp.exp(-ax * ax)
    return jnp.where(x >= 0.0, y, -y)


def _gelu_exact(x):
    # matches torch.nn.functional.gelu (approximate='none')
    return 0.5 * x * (1.0 + _erf_approx(x * (1.0 / math.sqrt(2.0))))


# ------------------------------ fused GPT kernel ------------------------------

def gpt_fused_kernel(src_ref,      # (Mb, D)       f32  flattened activations block
                     wqkv_ref,     # (1, D, 3D)    mm   fused in-proj (this layer)
                     bqkv_ref,     # (1, 1, 3D)    f32
                     wo_ref,       # (1, D, D)     mm   attn out-proj
                     w1t_ref,      # (1, D, FF)    mm
                     b1_ref,       # (1, 1, FF)    f32
                     w2t_ref,      # (1, FF, D)    mm
                     vecs_ref,     # (1, 9, D)     f32  [bo,cross,ln1g,ln1b,ln2g,ln2b,ln3g,ln3b,b2]
                     fln_ref,      # (2, D)        f32  final LayerNorm gamma/beta
                     wout_ref,     # (D, Vpad)     mm   lane-padded vocab projection
                     o_ref,        # (Mb, Vpad)    f32
                     x_scr,        # (Mb, D)       f32  activations carried across layer steps
                     ctx_scr,      # (Mb, D)       mm   head-concatenated attention context
                     *, num_layers, num_heads, batch_block, seq_len, mm_dtype):
    l = pl.program_id(1)
    _, D = x_scr.shape
    dh = D // num_heads
    S = seq_len
    scale = 1.0 / math.sqrt(dh)

    @pl.when(l == 0)
    def _():
        x_scr[...] = src_ref[...]

    x = x_scr[...]                                                     # (Mb, D) f32

    vec = vecs_ref[0]                                                  # (9, D)
    bo, cross = vec[0:1], vec[1:2]
    ln1g, ln1b = vec[2:3], vec[3:4]
    ln2g, ln2b = vec[4:5], vec[5:6]
    ln3g, ln3b = vec[6:7], vec[7:8]
    b2 = vec[8:9]

    # -------- self attention --------
    # Fused Q/K/V projection: one lane-dense (Mb, D)@(D, 3D) MXU pass; bias in f32,
    # then a single cast of the whole slab to the MXU operand dtype.
    qkv = (jnp.dot(x.astype(mm_dtype), wqkv_ref[0],
                   preferred_element_type=jnp.float32)
           + bqkv_ref[0]).astype(mm_dtype)                             # (Mb, 3D)

    # Scores/context are inherently per-(sequence, head) small matmuls; slices are
    # static so this stays pure 2-D MXU work with no relayout-heavy batched dots.
    # TODO(synk): at realistic S, replace with KV-tiled online softmax (flash style).
    for b in range(batch_block):
        r0 = b * S
        for h in range(num_heads):
            c0 = h * dh
            qh = qkv[r0:r0 + S, c0:c0 + dh]
            kh = qkv[r0:r0 + S, D + c0:D + c0 + dh]
            vh = qkv[r0:r0 + S, 2 * D + c0:2 * D + c0 + dh]
            s = jax.lax.dot_general(qh, kh, (((1,), (1,)), ((), ())),
                                    preferred_element_type=jnp.float32) * scale
            m = jnp.max(s, axis=-1, keepdims=True)
            p = jnp.exp(s - m)
            p = p * pl.reciprocal(jnp.sum(p, axis=-1, keepdims=True), approx=True)
            ctx = jnp.dot(p.astype(mm_dtype), vh, preferred_element_type=jnp.float32)
            ctx_scr[r0:r0 + S, c0:c0 + dh] = ctx.astype(ctx_scr.dtype)

    # Fused output projection: single (Mb, D)@(D, D) on the head-concatenated context.
    attn = jnp.dot(ctx_scr[...], wo_ref[0], preferred_element_type=jnp.float32) + bo

    y = _layer_norm(x + attn, ln1g, ln1b)
    # Cross attention against zero memory reduces to a per-layer constant vector.
    y = _layer_norm(y + cross, ln2g, ln2b)

    # -------- feed forward --------
    h1 = jnp.dot(y.astype(mm_dtype), w1t_ref[0],
                 preferred_element_type=jnp.float32) + b1_ref[0]
    h1 = _gelu_exact(h1)
    h2 = jnp.dot(h1.astype(mm_dtype), w2t_ref[0],
                 preferred_element_type=jnp.float32) + b2
    x_new = _layer_norm(y + h2, ln3g, ln3b)
    x_scr[...] = x_new

    # -------- final LayerNorm + (lane-padded) vocab projection, last layer only ----
    # TODO(synk): at realistic vocab sizes, add a V grid axis so wout streams in
    # 128-multiple lane tiles instead of being a single resident block.
    @pl.when(l == num_layers - 1)
    def _():
        yf = _layer_norm(x_new, fln_ref[0:1], fln_ref[1:2])
        o_ref[...] = jnp.dot(yf.astype(mm_dtype), wout_ref[...],
                             preferred_element_type=jnp.float32)


# ------------------------------ parameter setup -------------------------------

def init_params(key, cfg, matmul_dtype=MATMUL_DTYPE):
    D = cfg["embedding_dim"]
    V = cfg["vocab_size"]
    FF = cfg["feed_forward"]
    S = cfg["sequence_length"]
    L = cfg["transformer_layers"]

    keys = iter(jax.random.split(key, 16 * L + 8))
    nk = lambda: next(keys)

    # nn.Embedding: N(0,1) init, padding_idx row zeroed
    emb = jax.random.normal(nk(), (V, D), jnp.float32)
    emb = emb.at[cfg["padding_index"]].set(0.0)

    # sinusoidal positional encoding table (S, D)
    pos = jnp.arange(S, dtype=jnp.float32)[:, None]
    div = jnp.exp(jnp.arange(0, D, 2, dtype=jnp.float32) * (-math.log(10000.0) / D))
    pe = jnp.zeros((S, D), jnp.float32)
    pe = pe.at[:, 0::2].set(jnp.sin(pos * div))
    pe = pe.at[:, 1::2].set(jnp.cos(pos * div))

    ones = jnp.ones((D,), jnp.float32)
    zeros = jnp.zeros((D,), jnp.float32)

    wqkv_l, bqkv_l, wo_l, w1t_l, b1_l, w2t_l, vecs_l = [], [], [], [], [], [], []
    for _ in range(L):
        sa_w = jax.random.normal(nk(), (3 * D, D), jnp.float32) * 0.1   # self-attn in_proj
        sa_b = jax.random.normal(nk(), (3 * D,), jnp.float32) * 0.1
        sa_ow = jax.random.normal(nk(), (D, D), jnp.float32) * 0.1      # self-attn out_proj
        sa_ob = jax.random.normal(nk(), (D,), jnp.float32) * 0.1
        ca_b = jax.random.normal(nk(), (3 * D,), jnp.float32) * 0.1     # cross-attn in_proj_bias
        ca_ow = jax.random.normal(nk(), (D, D), jnp.float32) * 0.1      # cross-attn out_proj
        ca_ob = jax.random.normal(nk(), (D,), jnp.float32) * 0.1
        w1 = jax.random.normal(nk(), (FF, D), jnp.float32) * 0.1
        b1 = jax.random.normal(nk(), (FF,), jnp.float32) * 0.1
        w2 = jax.random.normal(nk(), (D, FF), jnp.float32) * 0.1
        b2 = jax.random.normal(nk(), (D,), jnp.float32) * 0.1

        wqkv_l.append(sa_w.T)                   # (D, 3D): x @ W_in^T, cols = [q | k | v]
        bqkv_l.append(sa_b[None, :])            # (1, 3D)
        wo_l.append(sa_ow.T)                    # (D, D):  ctx @ Wo^T
        w1t_l.append(w1.T)                      # (D, FF)
        b1_l.append(b1[None, :])                # (1, FF)
        w2t_l.append(w2.T)                      # (FF, D)

        # cross attention with memory == zeros: K,V rows are the key/value biases,
        # softmax is uniform, so the block output is out_proj(b_v)+b_o for every row.
        cross_const = ca_b[2 * D:] @ ca_ow.T + ca_ob
        vecs_l.append(jnp.stack([sa_ob, cross_const,
                                 ones, zeros,     # ln1
                                 ones, zeros,     # ln2
                                 ones, zeros,     # ln3
                                 b2]))            # (9, D)

    w_out = jax.random.normal(nk(), (V, D), jnp.float32) * 0.1   # nn.Linear(D, V, bias=False)
    v_pad = max(128, ((V + 127) // 128) * 128)                   # lane-dense output store
    w_out_t = jnp.zeros((D, v_pad), jnp.float32).at[:, :V].set(w_out.T)

    return dict(
        emb=emb, pe=pe,
        wqkv=jnp.stack(wqkv_l).astype(matmul_dtype),    # (L, D, 3D)
        bqkv=jnp.stack(bqkv_l).astype(jnp.float32),     # (L, 1, 3D)
        wo=jnp.stack(wo_l).astype(matmul_dtype),        # (L, D, D)
        w1t=jnp.stack(w1t_l).astype(matmul_dtype),      # (L, D, FF)
        b1=jnp.stack(b1_l).astype(jnp.float32),         # (L, 1, FF)
        w2t=jnp.stack(w2t_l).astype(matmul_dtype),      # (L, FF, D)
        vecs=jnp.stack(vecs_l).astype(jnp.float32),     # (L, 9, D)
        fln=jnp.stack([ones, zeros]),                   # (2, D)
        w_out_t=w_out_t.astype(matmul_dtype),           # (D, Vpad)
    )


# --------------------------------- forward -----------------------------------

def gpt_forward(token_ids, params, cfg, num_batch_blocks=None):
    # Embedding gather + positional encoding: plain-JAX glue (tiny, data-dependent
    # gather).  Dropout layers are identity (eval-mode semantics).
    src = jnp.take(params["emb"], token_ids, axis=0) + params["pe"][None]   # (B, S, D)
    B, S, D = src.shape
    V = cfg["vocab_size"]
    L = cfg["transformer_layers"]
    v_pad = params["w_out_t"].shape[-1]
    mm_dtype = params["wqkv"].dtype

    if num_batch_blocks is None:
        # 2 "parallel" blocks feed both v7x TensorCores; on single-TC v5e/v6e pass 1
        # so the whole batch folds into one larger matmul M.
        num_batch_blocks = 2 if (B % 2 == 0 and B >= 2) else 1
    assert B % num_batch_blocks == 0
    bb = B // num_batch_blocks          # sequences per grid block
    mb = bb * S                         # rows folded into the matmul M dimension

    src_flat = src.reshape(B * S, D)

    layer_names = ("wqkv", "bqkv", "wo", "w1t", "b1", "w2t", "vecs")
    layer_ws = [params[n] for n in layer_names]
    const_ws = [params["fln"], params["w_out_t"]]

    def layer_spec(w):                  # per-layer slab streamed over grid axis 1
        nd = w.ndim
        return pl.BlockSpec((1,) + w.shape[1:],
                            lambda b, l, _nd=nd: (l,) + (0,) * (_nd - 1))

    def const_spec(w):                  # fetched once, stays VMEM resident
        nd = w.ndim
        return pl.BlockSpec(w.shape, lambda b, l, _nd=nd: (0,) * _nd)

    kernel = functools.partial(
        gpt_fused_kernel,
        num_layers=L, num_heads=cfg["attention_heads"],
        batch_block=bb, seq_len=S, mm_dtype=mm_dtype)

    logits = pl.pallas_call(
        kernel,
        out_shape=jax.ShapeDtypeStruct((B * S, v_pad), jnp.float32),
        grid_spec=pltpu.PrefetchScalarGridSpec(
            num_scalar_prefetch=0,
            grid=(num_batch_blocks, L),          # batch blocks parallel, layers streamed
            in_specs=[pl.BlockSpec((mb, D), lambda b, l: (b, 0))]
                     + [layer_spec(w) for w in layer_ws]
                     + [const_spec(w) for w in const_ws],
            out_specs=pl.BlockSpec((mb, v_pad), lambda b, l: (b, 0)),
            scratch_shapes=[pltpu.VMEM((mb, D), jnp.float32),   # activations carried across layers
                            pltpu.VMEM((mb, D), mm_dtype)],     # head-concatenated attn context
        ),
        compiler_params=pltpu.CompilerParams(
            dimension_semantics=("parallel", "arbitrary")),
    )(src_flat, *layer_ws, *const_ws)

    if v_pad != V:
        logits = logits[:, :V]
    return logits    # (B*S, V) == results.view(-1, vocab_size)


# ----------------------------------- main -------------------------------------

if __name__ == "__main__":
    cfg = dict(vocab_size=32, embedding_dim=32, sequence_length=8,
               transformer_layers=2, attention_heads=2, dropout=0.0,
               feed_forward=64, padding_index=0)

    key = jax.random.PRNGKey(0)
    k_params, k_tokens = jax.random.split(key)
    params = init_params(k_params, cfg)

    B = 4
    tokens = jax.random.randint(k_tokens, (B, cfg["sequence_length"]), 0,
                                cfg["vocab_size"], dtype=jnp.int32)

    forward = jax.jit(lambda toks, prm: gpt_forward(toks, prm, cfg))
    out = forward(tokens, params)
    jax.block_until_ready(out)
    assert out.shape == (B * cfg["sequence_length"], cfg["vocab_size"])
    assert bool(jnp.all(jnp.isfinite(out)))
    print("KERNEL_OK")
</pallas_src>

<mosaic_0001>
module attributes {stable_mosaic.version = 11 : i64} {
  func.func @gpt_fused_kernel(%arg0: i32, %arg1: i32, %arg2: memref<16x32xf32, #tpu.memory_space<vmem>>, %arg3: memref<1x32x96xbf16, #tpu.memory_space<vmem>>, %arg4: memref<1x1x96xf32, #tpu.memory_space<vmem>>, %arg5: memref<1x32x32xbf16, #tpu.memory_space<vmem>>, %arg6: memref<1x32x64xbf16, #tpu.memory_space<vmem>>, %arg7: memref<1x1x64xf32, #tpu.memory_space<vmem>>, %arg8: memref<1x64x32xbf16, #tpu.memory_space<vmem>>, %arg9: memref<1x9x32xf32, #tpu.memory_space<vmem>>, %arg10: memref<2x32xf32, #tpu.memory_space<vmem>>, %arg11: memref<32x128xbf16, #tpu.memory_space<vmem>>, %arg12: memref<16x128xf32, #tpu.memory_space<vmem>>, %arg13: memref<16x32xf32, #tpu.memory_space<vmem>>, %arg14: memref<16x32xbf16, #tpu.memory_space<vmem>>) attributes {dimension_semantics = [#tpu.dimension_semantics<parallel>, #tpu.dimension_semantics<arbitrary>], iteration_bounds = array<i64: 2, 2>, scalar_prefetch = 0 : i64, scratch_operands = 2 : i64, tpu.core_type = #tpu.core_type<tc>, window_params = [{transform_indices = @transform_0, window_bounds = array<i64: 16, 32>}, {transform_indices = @transform_1, window_bounds = array<i64: 1, 32, 96>}, {transform_indices = @transform_2, window_bounds = array<i64: 1, 1, 96>}, {transform_indices = @transform_3, window_bounds = array<i64: 1, 32, 32>}, {transform_indices = @transform_4, window_bounds = array<i64: 1, 32, 64>}, {transform_indices = @transform_5, window_bounds = array<i64: 1, 1, 64>}, {transform_indices = @transform_6, window_bounds = array<i64: 1, 64, 32>}, {transform_indices = @transform_7, window_bounds = array<i64: 1, 9, 32>}, {pipeline_mode = #tpu.pipeline_mode<synchronous>, transform_indices = @transform_8, window_bounds = array<i64: 2, 32>}, {pipeline_mode = #tpu.pipeline_mode<synchronous>, transform_indices = @transform_9, window_bounds = array<i64: 32, 128>}, {transform_indices = @transform_10, window_bounds = array<i64: 16, 128>}]} {
    %c0_i32 = arith.constant 0 : i32
    %0 = arith.cmpi eq, %arg1, %c0_i32 : i32
    %1 = arith.extui %0 : i1 to i32
    %c0_i32_0 = arith.constant 0 : i32
    %2 = arith.cmpi ne, %1, %c0_i32_0 : i32
    scf.if %2 {
      %c0_89 = arith.constant 0 : index
      %c0_90 = arith.constant 0 : index
      %242 = vector.load %arg2[%c0_89, %c0_90] : memref<16x32xf32, #tpu.memory_space<vmem>>, vector<16x32xf32>
      %c0_91 = arith.constant 0 : index
      %c0_92 = arith.constant 0 : index
      %243 = vector.load %arg13[%c0_91, %c0_92] : memref<16x32xf32, #tpu.memory_space<vmem>>, vector<16x32xf32>
      tpu.vector_store %arg13[%c0_91, %c0_92], %242 {strides = array<i32>} : memref<16x32xf32, #tpu.memory_space<vmem>>, vector<16x32xf32>,
    } else {
    }
    %c0 = arith.constant 0 : index
    %c0_1 = arith.constant 0 : index
    %3 = vector.load %arg13[%c0, %c0_1] : memref<16x32xf32, #tpu.memory_space<vmem>>, vector<16x32xf32>
    %c0_2 = arith.constant 0 : index
    %c0_3 = arith.constant 0 : index
    %c0_4 = arith.constant 0 : index
    %4 = vector.load %arg9[%c0_2, %c0_3, %c0_4] : memref<1x9x32xf32, #tpu.memory_space<vmem>>, vector<1x9x32xf32>
    %5 = vector.shape_cast %4 : vector<1x9x32xf32> to vector<9x32xf32>
    %6 = vector.extract_strided_slice %5 {offsets = [0, 0], sizes = [1, 32], strides = [1, 1]} : vector<9x32xf32> to vector<1x32xf32>
    %7 = vector.extract_strided_slice %5 {offsets = [1, 0], sizes = [1, 32], strides = [1, 1]} : vector<9x32xf32> to vector<1x32xf32>
    %8 = vector.extract_strided_slice %5 {offsets = [2, 0], sizes = [1, 32], strides = [1, 1]} : vector<9x32xf32> to vector<1x32xf32>
    %9 = vector.extract_strided_slice %5 {offsets = [3, 0], sizes = [1, 32], strides = [1, 1]} : vector<9x32xf32> to vector<1x32xf32>
    %10 = vector.extract_strided_slice %5 {offsets = [4, 0], sizes = [1, 32], strides = [1, 1]} : vector<9x32xf32> to vector<1x32xf32>
    %11 = vector.extract_strided_slice %5 {offsets = [5, 0], sizes = [1, 32], strides = [1, 1]} : vector<9x32xf32> to vector<1x32xf32>
    %12 = vector.extract_strided_slice %5 {offsets = [6, 0], sizes = [1, 32], strides = [1, 1]} : vector<9x32xf32> to vector<1x32xf32>
    %13 = vector.extract_strided_slice %5 {offsets = [7, 0], sizes = [1, 32], strides = [1, 1]} : vector<9x32xf32> to vector<1x32xf32>
    %14 = vector.extract_strided_slice %5 {offsets = [8, 0], sizes = [1, 32], strides = [1, 1]} : vector<9x32xf32> to vector<1x32xf32>
    %15 = arith.truncf %3 : vector<16x32xf32> to vector<16x32xbf16>
    %c0_5 = arith.constant 0 : index
    %c0_6 = arith.constant 0 : index
    %c0_7 = arith.constant 0 : index
    %16 = vector.load %arg3[%c0_5, %c0_6, %c0_7] : memref<1x32x96xbf16, #tpu.memory_space<vmem>>, vector<1x32x96xbf16>
    %17 = vector.shape_cast %16 : vector<1x32x96xbf16> to vector<32x96xbf16>
    %cst = arith.constant dense<0.000000e+00> : vector<16x96xf32>
    %18 = tpu.matmul %15, %17, %cst {dimension_numbers = #tpu.dot_dimension_numbers<[1], [0], [0], [1], [0, 0, 1, 1], [], []>} : vector<16x32xbf16>, vector<32x96xbf16>, vector<16x96xf32> -> vector<16x96xf32>
    %c0_8 = arith.constant 0 : index
    %c0_9 = arith.constant 0 : index
    %c0_10 = arith.constant 0 : index
    %19 = vector.load %arg4[%c0_8, %c0_9, %c0_10] : memref<1x1x96xf32, #tpu.memory_space<vmem>>, vector<1x1x96xf32>
    %20 = vector.shape_cast %19 : vector<1x1x96xf32> to vector<1x96xf32>
    %21 = vector.broadcast %20 : vector<1x96xf32> to vector<16x96xf32>
    %22 = arith.addf %18, %21 : vector<16x96xf32>
    %23 = arith.truncf %22 : vector<16x96xf32> to vector<16x96xbf16>
    %24 = vector.extract_strided_slice %23 {offsets = [0, 0], sizes = [8, 16], strides = [1, 1]} : vector<16x96xbf16> to vector<8x16xbf16>
    %25 = vector.extract_strided_slice %23 {offsets = [0, 32], sizes = [8, 16], strides = [1, 1]} : vector<16x96xbf16> to vector<8x16xbf16>
    %26 = vector.extract_strided_slice %23 {offsets = [0, 64], sizes = [8, 16], strides = [1, 1]} : vector<16x96xbf16> to vector<8x16xbf16>
    %cst_11 = arith.constant dense<0.000000e+00> : vector<8x8xf32>
    %27 = tpu.matmul %24, %25, %cst_11 {dimension_numbers = #tpu.dot_dimension_numbers<[1], [1], [0], [0], [0, 0, 1, 0], [], []>} : vector<8x16xbf16>, vector<8x16xbf16>, vector<8x8xf32> -> vector<8x8xf32>
    %cst_12 = arith.constant 2.500000e-01 : f32
    %28 = vector.broadcast %cst_12 : f32 to vector<8x8xf32>
    %29 = arith.mulf %27, %28 : vector<8x8xf32>
    %cst_13 = arith.constant dense<0xFF800000> : vector<8xf32>
    %30 = vector.multi_reduction <maximumf>, %29, %cst_13 [1] : vector<8x8xf32> to vector<8xf32>
    %31 = vector.shape_cast %30 : vector<8xf32> to vector<8x1xf32>
    %32 = vector.broadcast %31 : vector<8x1xf32> to vector<8x8xf32>
    %33 = arith.subf %29, %32 : vector<8x8xf32>
    %34 = math.exp %33 : vector<8x8xf32>
    %cst_14 = arith.constant dense<0.000000e+00> : vector<8xf32>
    %35 = vector.multi_reduction <add>, %34, %cst_14 [1] : vector<8x8xf32> to vector<8xf32>
    %36 = vector.shape_cast %35 : vector<8xf32> to vector<8x1xf32>
    %37 = tpu.reciprocal %36 {approx = true} : vector<8x1xf32> -> vector<8x1xf32>
    %38 = vector.broadcast %37 : vector<8x1xf32> to vector<8x8xf32>
    %39 = arith.mulf %34, %38 : vector<8x8xf32>
    %40 = arith.truncf %39 : vector<8x8xf32> to vector<8x8xbf16>
    %cst_15 = arith.constant dense<0.000000e+00> : vector<8x16xf32>
    %41 = tpu.matmul %40, %26, %cst_15 {dimension_numbers = #tpu.dot_dimension_numbers<[1], [0], [0], [1], [0, 0, 1, 1], [], []>} : vector<8x8xbf16>, vector<8x16xbf16>, vector<8x16xf32> -> vector<8x16xf32>
    %42 = arith.truncf %41 : vector<8x16xf32> to vector<8x16xbf16>
    %c0_16 = arith.constant 0 : index
    %c0_17 = arith.constant 0 : index
    %43 = vector.load %arg14[%c0_16, %c0_17] : memref<16x32xbf16, #tpu.memory_space<vmem>>, vector<8x16xbf16>
    tpu.vector_store %arg14[%c0_16, %c0_17], %42 {strides = array<i32>} : memref<16x32xbf16, #tpu.memory_space<vmem>>, vector<8x16xbf16>,
    %44 = vector.extract_strided_slice %23 {offsets = [0, 16], sizes = [8, 16], strides = [1, 1]} : vector<16x96xbf16> to vector<8x16xbf16>
    %45 = vector.extract_strided_slice %23 {offsets = [0, 48], sizes = [8, 16], strides = [1, 1]} : vector<16x96xbf16> to vector<8x16xbf16>
    %46 = vector.extract_strided_slice %23 {offsets = [0, 80], sizes = [8, 16], strides = [1, 1]} : vector<16x96xbf16> to vector<8x16xbf16>
    %cst_18 = arith.constant dense<0.000000e+00> : vector<8x8xf32>
    %47 = tpu.matmul %44, %45, %cst_18 {dimension_numbers = #tpu.dot_dimension_numbers<[1], [1], [0], [0], [0, 0, 1, 0], [], []>} : vector<8x16xbf16>, vector<8x16xbf16>, vector<8x8xf32> -> vector<8x8xf32>
    %cst_19 = arith.constant 2.500000e-01 : f32
    %48 = vector.broadcast %cst_19 : f32 to vector<8x8xf32>
    %49 = arith.mulf %47, %48 : vector<8x8xf32>
    %cst_20 = arith.constant dense<0xFF800000> : vector<8xf32>
    %50 = vector.multi_reduction <maximumf>, %49, %cst_20 [1] : vector<8x8xf32> to vector<8xf32>
    %51 = vector.shape_cast %50 : vector<8xf32> to vector<8x1xf32>
    %52 = vector.broadcast %51 : vector<8x1xf32> to vector<8x8xf32>
    %53 = arith.subf %49, %52 : vector<8x8xf32>
    %54 = math.exp %53 : vector<8x8xf32>
    %cst_21 = arith.constant dense<0.000000e+00> : vector<8xf32>
    %55 = vector.multi_reduction <add>, %54, %cst_21 [1] : vector<8x8xf32> to vector<8xf32>
    %56 = vector.shape_cast %55 : vector<8xf32> to vector<8x1xf32>
    %57 = tpu.reciprocal %56 {approx = true} : vector<8x1xf32> -> vector<8x1xf32>
    %58 = vector.broadcast %57 : vector<8x1xf32> to vector<8x8xf32>
    %59 = arith.mulf %54, %58 : vector<8x8xf32>
    %60 = arith.truncf %59 : vector<8x8xf32> to vector<8x8xbf16>
    %cst_22 = arith.constant dense<0.000000e+00> : vector<8x16xf32>
    %61 = tpu.matmul %60, %46, %cst_22 {dimension_numbers = #tpu.dot_dimension_numbers<[1], [0], [0], [1], [0, 0, 1, 1], [], []>} : vector<8x8xbf16>, vector<8x16xbf16>, vector<8x16xf32> -> vector<8x16xf32>
    %62 = arith.truncf %61 : vector<8x16xf32> to vector<8x16xbf16>
    %c0_23 = arith.constant 0 : index
    %c16 = arith.constant 16 : index
    %63 = vector.load %arg14[%c0_23, %c16] : memref<16x32xbf16, #tpu.memory_space<vmem>>, vector<8x16xbf16>
    tpu.vector_store %arg14[%c0_23, %c16], %62 {strides = array<i32>} : memref<16x32xbf16, #tpu.memory_space<vmem>>, vector<8x16xbf16>,
    %64 = vector.extract_strided_slice %23 {offsets = [8, 0], sizes = [8, 16], strides = [1, 1]} : vector<16x96xbf16> to vector<8x16xbf16>
    %65 = vector.extract_strided_slice %23 {offsets = [8, 32], sizes = [8, 16], strides = [1, 1]} : vector<16x96xbf16> to vector<8x16xbf16>
    %66 = vector.extract_strided_slice %23 {offsets = [8, 64], sizes = [8, 16], strides = [1, 1]} : vector<16x96xbf16> to vector<8x16xbf16>
    %cst_24 = arith.constant dense<0.000000e+00> : vector<8x8xf32>
    %67 = tpu.matmul %64, %65, %cst_24 {dimension_numbers = #tpu.dot_dimension_numbers<[1], [1], [0], [0], [0, 0, 1, 0], [], []>} : vector<8x16xbf16>, vector<8x16xbf16>, vector<8x8xf32> -> vector<8x8xf32>
    %cst_25 = arith.constant 2.500000e-01 : f32
    %68 = vector.broadcast %cst_25 : f32 to vector<8x8xf32>
    %69 = arith.mulf %67, %68 : vector<8x8xf32>
    %cst_26 = arith.constant dense<0xFF800000> : vector<8xf32>
    %70 = vector.multi_reduction <maximumf>, %69, %cst_26 [1] : vector<8x8xf32> to vector<8xf32>
    %71 = vector.shape_cast %70 : vector<8xf32> to vector<8x1xf32>
    %72 = vector.broadcast %71 : vector<8x1xf32> to vector<8x8xf32>
    %73 = arith.subf %69, %72 : vector<8x8xf32>
    %74 = math.exp %73 : vector<8x8xf32>
    %cst_27 = arith.constant dense<0.000000e+00> : vector<8xf32>
    %75 = vector.multi_reduction <add>, %74, %cst_27 [1] : vector<8x8xf32> to vector<8xf32>
    %76 = vector.shape_cast %75 : vector<8xf32> to vector<8x1xf32>
    %77 = tpu.reciprocal %76 {approx = true} : vector<8x1xf32> -> vector<8x1xf32>
    %78 = vector.broadcast %77 : vector<8x1xf32> to vector<8x8xf32>
    %79 = arith.mulf %74, %78 : vector<8x8xf32>
    %80 = arith.truncf %79 : vector<8x8xf32> to vector<8x8xbf16>
    %cst_28 = arith.constant dense<0.000000e+00> : vector<8x16xf32>
    %81 = tpu.matmul %80, %66, %cst_28 {dimension_numbers = #tpu.dot_dimension_numbers<[1], [0], [0], [1], [0, 0, 1, 1], [], []>} : vector<8x8xbf16>, vector<8x16xbf16>, vector<8x16xf32> -> vector<8x16xf32>
    %82 = arith.truncf %81 : vector<8x16xf32> to vector<8x16xbf16>
    %c8 = arith.constant 8 : index
    %c0_29 = arith.constant 0 : index
    %83 = vector.load %arg14[%c8, %c0_29] : memref<16x32xbf16, #tpu.memory_space<vmem>>, vector<8x16xbf16>
    tpu.vector_store %arg14[%c8, %c0_29], %82 {strides = array<i32>} : memref<16x32xbf16, #tpu.memory_space<vmem>>, vector<8x16xbf16>,
    %84 = vector.extract_strided_slice %23 {offsets = [8, 16], sizes = [8, 16], strides = [1, 1]} : vector<16x96xbf16> to vector<8x16xbf16>
    %85 = vector.extract_strided_slice %23 {offsets = [8, 48], sizes = [8, 16], strides = [1, 1]} : vector<16x96xbf16> to vector<8x16xbf16>
    %86 = vector.extract_strided_slice %23 {offsets = [8, 80], sizes = [8, 16], strides = [1, 1]} : vector<16x96xbf16> to vector<8x16xbf16>
    %cst_30 = arith.constant dense<0.000000e+00> : vector<8x8xf32>
    %87 = tpu.matmul %84, %85, %cst_30 {dimension_numbers = #tpu.dot_dimension_numbers<[1], [1], [0], [0], [0, 0, 1, 0], [], []>} : vector<8x16xbf16>, vector<8x16xbf16>, vector<8x8xf32> -> vector<8x8xf32>
    %cst_31 = arith.constant 2.500000e-01 : f32
    %88 = vector.broadcast %cst_31 : f32 to vector<8x8xf32>
    %89 = arith.mulf %87, %88 : vector<8x8xf32>
    %cst_32 = arith.constant dense<0xFF800000> : vector<8xf32>
    %90 = vector.multi_reduction <maximumf>, %89, %cst_32 [1] : vector<8x8xf32> to vector<8xf32>
    %91 = vector.shape_cast %90 : vector<8xf32> to vector<8x1xf32>
    %92 = vector.broadcast %91 : vector<8x1xf32> to vector<8x8xf32>
    %93 = arith.subf %89, %92 : vector<8x8xf32>
    %94 = math.exp %93 : vector<8x8xf32>
    %cst_33 = arith.constant dense<0.000000e+00> : vector<8xf32>
    %95 = vector.multi_reduction <add>, %94, %cst_33 [1] : vector<8x8xf32> to vector<8xf32>
    %96 = vector.shape_cast %95 : vector<8xf32> to vector<8x1xf32>
    %97 = tpu.reciprocal %96 {approx = true} : vector<8x1xf32> -> vector<8x1xf32>
    %98 = vector.broadcast %97 : vector<8x1xf32> to vector<8x8xf32>
    %99 = arith.mulf %94, %98 : vector<8x8xf32>
    %100 = arith.truncf %99 : vector<8x8xf32> to vector<8x8xbf16>
    %cst_34 = arith.constant dense<0.000000e+00> : vector<8x16xf32>
    %101 = tpu.matmul %100, %86, %cst_34 {dimension_numbers = #tpu.dot_dimension_numbers<[1], [0], [0], [1], [0, 0, 1, 1], [], []>} : vector<8x8xbf16>, vector<8x16xbf16>, vector<8x16xf32> -> vector<8x16xf32>
    %102 = arith.truncf %101 : vector<8x16xf32> to vector<8x16xbf16>
    %c8_35 = arith.constant 8 : index
    %c16_36 = arith.constant 16 : index
    %103 = vector.load %arg14[%c8_35, %c16_36] : memref<16x32xbf16, #tpu.memory_space<vmem>>, vector<8x16xbf16>
    tpu.vector_store %arg14[%c8_35, %c16_36], %102 {strides = array<i32>} : memref<16x32xbf16, #tpu.memory_space<vmem>>, vector<8x16xbf16>,
    %c0_37 = arith.constant 0 : index
    %c0_38 = arith.constant 0 : index
    %104 = vector.load %arg14[%c0_37, %c0_38] : memref<16x32xbf16, #tpu.memory_space<vmem>>, vector<16x32xbf16>
    %c0_39 = arith.constant 0 : index
    %c0_40 = arith.constant 0 : index
    %c0_41 = arith.constant 0 : index
    %105 = vector.load %arg5[%c0_39, %c0_40, %c0_41] : memref<1x32x32xbf16, #tpu.memory_space<vmem>>, vector<1x32x32xbf16>
    %106 = vector.shape_cast %105 : vector<1x32x32xbf16> to vector<32x32xbf16>
    %cst_42 = arith.constant dense<0.000000e+00> : vector<16x32xf32>
    %107 = tpu.matmul %104, %106, %cst_42 {dimension_numbers = #tpu.dot_dimension_numbers<[1], [0], [0], [1], [0, 0, 1, 1], [], []>} : vector<16x32xbf16>, vector<32x32xbf16>, vector<16x32xf32> -> vector<16x32xf32>
    %108 = vector.broadcast %6 : vector<1x32xf32> to vector<16x32xf32>
    %109 = arith.addf %107, %108 : vector<16x32xf32>
    %110 = arith.addf %3, %109 : vector<16x32xf32>
    %cst_43 = arith.constant dense<0.000000e+00> : vector<16xf32>
    %111 = vector.multi_reduction <add>, %110, %cst_43 [1] : vector<16x32xf32> to vector<16xf32>
    %112 = vector.shape_cast %111 : vector<16xf32> to vector<16x1xf32>
    %cst_44 = arith.constant 3.200000e+01 : f32
    %113 = vector.broadcast %cst_44 : f32 to vector<16x1xf32>
    %114 = arith.divf %112, %113 : vector<16x1xf32>
    %115 = vector.broadcast %114 : vector<16x1xf32> to vector<16x32xf32>
    %116 = arith.subf %110, %115 : vector<16x32xf32>
    %117 = arith.mulf %116, %116 : vector<16x32xf32>
    %cst_45 = arith.constant dense<0.000000e+00> : vector<16xf32>
    %118 = vector.multi_reduction <add>, %117, %cst_45 [1] : vector<16x32xf32> to vector<16xf32>
    %119 = vector.shape_cast %118 : vector<16xf32> to vector<16x1xf32>
    %cst_46 = arith.constant 3.200000e+01 : f32
    %120 = vector.broadcast %cst_46 : f32 to vector<16x1xf32>
    %121 = arith.divf %119, %120 : vector<16x1xf32>
    %122 = vector.broadcast %114 : vector<16x1xf32> to vector<16x32xf32>
    %123 = arith.subf %110, %122 : vector<16x32xf32>
    %cst_47 = arith.constant 9.99999974E-6 : f32
    %124 = vector.broadcast %cst_47 : f32 to vector<16x1xf32>
    %125 = arith.addf %121, %124 : vector<16x1xf32>
    %126 = math.rsqrt %125 : vector<16x1xf32>
    %127 = vector.broadcast %126 : vector<16x1xf32> to vector<16x32xf32>
    %128 = arith.mulf %123, %127 : vector<16x32xf32>
    %129 = vector.broadcast %8 : vector<1x32xf32> to vector<16x32xf32>
    %130 = arith.mulf %128, %129 : vector<16x32xf32>
    %131 = vector.broadcast %9 : vector<1x32xf32> to vector<16x32xf32>
    %132 = arith.addf %130, %131 : vector<16x32xf32>
    %133 = vector.broadcast %7 : vector<1x32xf32> to vector<16x32xf32>
    %134 = arith.addf %132, %133 : vector<16x32xf32>
    %cst_48 = arith.constant dense<0.000000e+00> : vector<16xf32>
    %135 = vector.multi_reduction <add>, %134, %cst_48 [1] : vector<16x32xf32> to vector<16xf32>
    %136 = vector.shape_cast %135 : vector<16xf32> to vector<16x1xf32>
    %cst_49 = arith.constant 3.200000e+01 : f32
    %137 = vector.broadcast %cst_49 : f32 to vector<16x1xf32>
    %138 = arith.divf %136, %137 : vector<16x1xf32>
    %139 = vector.broadcast %138 : vector<16x1xf32> to vector<16x32xf32>
    %140 = arith.subf %134, %139 : vector<16x32xf32>
    %141 = arith.mulf %140, %140 : vector<16x32xf32>
    %cst_50 = arith.constant dense<0.000000e+00> : vector<16xf32>
    %142 = vector.multi_reduction <add>, %141, %cst_50 [1] : vector<16x32xf32> to vector<16xf32>
    %143 = vector.shape_cast %142 : vector<16xf32> to vector<16x1xf32>
    %cst_51 = arith.constant 3.200000e+01 : f32
    %144 = vector.broadcast %cst_51 : f32 to vector<16x1xf32>
    %145 = arith.divf %143, %144 : vector<16x1xf32>
    %146 = vector.broadcast %138 : vector<16x1xf32> to vector<16x32xf32>
    %147 = arith.subf %134, %146 : vector<16x32xf32>
    %cst_52 = arith.constant 9.99999974E-6 : f32
    %148 = vector.broadcast %cst_52 : f32 to vector<16x1xf32>
    %149 = arith.addf %145, %148 : vector<16x1xf32>
    %150 = math.rsqrt %149 : vector<16x1xf32>
    %151 = vector.broadcast %150 : vector<16x1xf32> to vector<16x32xf32>
    %152 = arith.mulf %147, %151 : vector<16x32xf32>
    %153 = vector.broadcast %10 : vector<1x32xf32> to vector<16x32xf32>
    %154 = arith.mulf %152, %153 : vector<16x32xf32>
    %155 = vector.broadcast %11 : vector<1x32xf32> to vector<16x32xf32>
    %156 = arith.addf %154, %155 : vector<16x32xf32>
    %157 = arith.truncf %156 : vector<16x32xf32> to vector<16x32xbf16>
    %c0_53 = arith.constant 0 : index
    %c0_54 = arith.constant 0 : index
    %c0_55 = arith.constant 0 : index
    %158 = vector.load %arg6[%c0_53, %c0_54, %c0_55] : memref<1x32x64xbf16, #tpu.memory_space<vmem>>, vector<1x32x64xbf16>
    %159 = vector.shape_cast %158 : vector<1x32x64xbf16> to vector<32x64xbf16>
    %cst_56 = arith.constant dense<0.000000e+00> : vector<16x64xf32>
    %160 = tpu.matmul %157, %159, %cst_56 {dimension_numbers = #tpu.dot_dimension_numbers<[1], [0], [0], [1], [0, 0, 1, 1], [], []>} : vector<16x32xbf16>, vector<32x64xbf16>, vector<16x64xf32> -> vector<16x64xf32>
    %c0_57 = arith.constant 0 : index
    %c0_58 = arith.constant 0 : index
    %c0_59 = arith.constant 0 : index
    %161 = vector.load %arg7[%c0_57, %c0_58, %c0_59] : memref<1x1x64xf32, #tpu.memory_space<vmem>>, vector<1x1x64xf32>
    %162 = vector.shape_cast %161 : vector<1x1x64xf32> to vector<1x64xf32>
    %163 = vector.broadcast %162 : vector<1x64xf32> to vector<16x64xf32>
    %164 = arith.addf %160, %163 : vector<16x64xf32>
    %cst_60 = arith.constant 5.000000e-01 : f32
    %165 = vector.broadcast %cst_60 : f32 to vector<16x64xf32>
    %166 = arith.mulf %165, %164 : vector<16x64xf32>
    %cst_61 = arith.constant 0.707106769 : f32
    %167 = vector.broadcast %cst_61 : f32 to vector<16x64xf32>
    %168 = arith.mulf %164, %167 : vector<16x64xf32>
    %cst_62 = arith.constant 0.000000e+00 : f32
    %169 = vector.broadcast %cst_62 : f32 to vector<16x64xf32>
    %170 = arith.cmpf oge, %168, %169 : vector<16x64xf32>
    %cst_63 = arith.constant 0.000000e+00 : f32
    %171 = vector.broadcast %cst_63 : f32 to vector<16x64xf32>
    %172 = arith.subf %171, %168 : vector<16x64xf32>
    %173 = arith.select %170, %168, %172 : vector<16x64xi1>, vector<16x64xf32>
    %cst_64 = arith.constant 0.327591091 : f32
    %174 = vector.broadcast %cst_64 : f32 to vector<16x64xf32>
    %175 = arith.mulf %174, %173 : vector<16x64xf32>
    %cst_65 = arith.constant 1.000000e+00 : f32
    %176 = vector.broadcast %cst_65 : f32 to vector<16x64xf32>
    %177 = arith.addf %176, %175 : vector<16x64xf32>
    %cst_66 = arith.constant 1.000000e+00 : f32
    %178 = vector.broadcast %cst_66 : f32 to vector<16x64xf32>
    %179 = arith.divf %178, %177 : vector<16x64xf32>
    %cst_67 = arith.constant 1.06140542 : f32
    %180 = vector.broadcast %cst_67 : f32 to vector<16x64xf32>
    %181 = arith.mulf %180, %179 : vector<16x64xf32>
    %cst_68 = arith.constant -1.45315206 : f32
    %182 = vector.broadcast %cst_68 : f32 to vector<16x64xf32>
    %183 = arith.addf %181, %182 : vector<16x64xf32>
    %184 = arith.mulf %183, %179 : vector<16x64xf32>
    %cst_69 = arith.constant 1.42141378 : f32
    %185 = vector.broadcast %cst_69 : f32 to vector<16x64xf32>
    %186 = arith.addf %184, %185 : vector<16x64xf32>
    %187 = arith.mulf %186, %179 : vector<16x64xf32>
    %cst_70 = arith.constant -0.284496725 : f32
    %188 = vector.broadcast %cst_70 : f32 to vector<16x64xf32>
    %189 = arith.addf %187, %188 : vector<16x64xf32>
    %190 = arith.mulf %189, %179 : vector<16x64xf32>
    %cst_71 = arith.constant 0.254829586 : f32
    %191 = vector.broadcast %cst_71 : f32 to vector<16x64xf32>
    %192 = arith.addf %190, %191 : vector<16x64xf32>
    %193 = arith.mulf %192, %179 : vector<16x64xf32>
    %cst_72 = arith.constant 0.000000e+00 : f32
    %194 = vector.broadcast %cst_72 : f32 to vector<16x64xf32>
    %195 = arith.subf %194, %173 : vector<16x64xf32>
    %196 = arith.mulf %195, %173 : vector<16x64xf32>
    %197 = math.exp %196 : vector<16x64xf32>
    %198 = arith.mulf %193, %197 : vector<16x64xf32>
    %cst_73 = arith.constant 1.000000e+00 : f32
    %199 = vector.broadcast %cst_73 : f32 to vector<16x64xf32>
    %200 = arith.subf %199, %198 : vector<16x64xf32>
    %cst_74 = arith.constant 0.000000e+00 : f32
    %201 = vector.broadcast %cst_74 : f32 to vector<16x64xf32>
    %202 = arith.cmpf oge, %168, %201 : vector<16x64xf32>
    %cst_75 = arith.constant 0.000000e+00 : f32
    %203 = vector.broadcast %cst_75 : f32 to vector<16x64xf32>
    %204 = arith.subf %203, %200 : vector<16x64xf32>
    %205 = arith.select %202, %200, %204 : vector<16x64xi1>, vector<16x64xf32>
    %cst_76 = arith.constant 1.000000e+00 : f32
    %206 = vector.broadcast %cst_76 : f32 to vector<16x64xf32>
    %207 = arith.addf %206, %205 : vector<16x64xf32>
    %208 = arith.mulf %166, %207 : vector<16x64xf32>
    %209 = arith.truncf %208 : vector<16x64xf32> to vector<16x64xbf16>
    %c0_77 = arith.constant 0 : index
    %c0_78 = arith.constant 0 : index
    %c0_79 = arith.constant 0 : index
    %210 = vector.load %arg8[%c0_77, %c0_78, %c0_79] : memref<1x64x32xbf16, #tpu.memory_space<vmem>>, vector<1x64x32xbf16>
    %211 = vector.shape_cast %210 : vector<1x64x32xbf16> to vector<64x32xbf16>
    %cst_80 = arith.constant dense<0.000000e+00> : vector<16x32xf32>
    %212 = tpu.matmul %209, %211, %cst_80 {dimension_numbers = #tpu.dot_dimension_numbers<[1], [0], [0], [1], [0, 0, 1, 1], [], []>} : vector<16x64xbf16>, vector<64x32xbf16>, vector<16x32xf32> -> vector<16x32xf32>
    %213 = vector.broadcast %14 : vector<1x32xf32> to vector<16x32xf32>
    %214 = arith.addf %212, %213 : vector<16x32xf32>
    %215 = arith.addf %156, %214 : vector<16x32xf32>
    %cst_81 = arith.constant dense<0.000000e+00> : vector<16xf32>
    %216 = vector.multi_reduction <add>, %215, %cst_81 [1] : vector<16x32xf32> to vector<16xf32>
    %217 = vector.shape_cast %216 : vector<16xf32> to vector<16x1xf32>
    %cst_82 = arith.constant 3.200000e+01 : f32
    %218 = vector.broadcast %cst_82 : f32 to vector<16x1xf32>
    %219 = arith.divf %217, %218 : vector<16x1xf32>
    %220 = vector.broadcast %219 : vector<16x1xf32> to vector<16x32xf32>
    %221 = arith.subf %215, %220 : vector<16x32xf32>
    %222 = arith.mulf %221, %221 : vector<16x32xf32>
    %cst_83 = arith.constant dense<0.000000e+00> : vector<16xf32>
    %223 = vector.multi_reduction <add>, %222, %cst_83 [1] : vector<16x32xf32> to vector<16xf32>
    %224 = vector.shape_cast %223 : vector<16xf32> to vector<16x1xf32>
    %cst_84 = arith.constant 3.200000e+01 : f32
    %225 = vector.broadcast %cst_84 : f32 to vector<16x1xf32>
    %226 = arith.divf %224, %225 : vector<16x1xf32>
    %227 = vector.broadcast %219 : vector<16x1xf32> to vector<16x32xf32>
    %228 = arith.subf %215, %227 : vector<16x32xf32>
    %cst_85 = arith.constant 9.99999974E-6 : f32
    %229 = vector.broadcast %cst_85 : f32 to vector<16x1xf32>
    %230 = arith.addf %226, %229 : vector<16x1xf32>
    %231 = math.rsqrt %230 : vector<16x1xf32>
    %232 = vector.broadcast %231 : vector<16x1xf32> to vector<16x32xf32>
    %233 = arith.mulf %228, %232 : vector<16x32xf32>
    %234 = vector.broadcast %12 : vector<1x32xf32> to vector<16x32xf32>
    %235 = arith.mulf %233, %234 : vector<16x32xf32>
    %236 = vector.broadcast %13 : vector<1x32xf32> to vector<16x32xf32>
    %237 = arith.addf %235, %236 : vector<16x32xf32>
    %c0_86 = arith.constant 0 : index
    %c0_87 = arith.constant 0 : index
    %238 = vector.load %arg13[%c0_86, %c0_87] : memref<16x32xf32, #tpu.memory_space<vmem>>, vector<16x32xf32>
    tpu.vector_store %arg13[%c0_86, %c0_87], %237 {strides = array<i32>} : memref<16x32xf32, #tpu.memory_space<vmem>>, vector<16x32xf32>,
    %c1_i32 = arith.constant 1 : i32
    %239 = arith.cmpi eq, %arg1, %c1_i32 : i32
    %240 = arith.extui %239 : i1 to i32
    %c0_i32_88 = arith.constant 0 : i32
    %241 = arith.cmpi ne, %240, %c0_i32_88 : i32
    scf.if %241 {
      %c0_89 = arith.constant 0 : index
      %c0_90 = arith.constant 0 : index
      %242 = vector.load %arg10[%c0_89, %c0_90] : memref<2x32xf32, #tpu.memory_space<vmem>>, vector<1x32xf32>
      %c1 = arith.constant 1 : index
      %c0_91 = arith.constant 0 : index
      %243 = vector.load %arg10[%c1, %c0_91] : memref<2x32xf32, #tpu.memory_space<vmem>>, vector<1x32xf32>
      %cst_92 = arith.constant dense<0.000000e+00> : vector<16xf32>
      %244 = vector.multi_reduction <add>, %237, %cst_92 [1] : vector<16x32xf32> to vector<16xf32>
      %245 = vector.shape_cast %244 : vector<16xf32> to vector<16x1xf32>
      %cst_93 = arith.constant 3.200000e+01 : f32
      %246 = vector.broadcast %cst_93 : f32 to vector<16x1xf32>
      %247 = arith.divf %245, %246 : vector<16x1xf32>
      %248 = vector.broadcast %247 : vector<16x1xf32> to vector<16x32xf32>
      %249 = arith.subf %237, %248 : vector<16x32xf32>
      %250 = arith.mulf %249, %249 : vector<16x32xf32>
      %cst_94 = arith.constant dense<0.000000e+00> : vector<16xf32>
      %251 = vector.multi_reduction <add>, %250, %cst_94 [1] : vector<16x32xf32> to vector<16xf32>
      %252 = vector.shape_cast %251 : vector<16xf32> to vector<16x1xf32>
      %cst_95 = arith.constant 3.200000e+01 : f32
      %253 = vector.broadcast %cst_95 : f32 to vector<16x1xf32>
      %254 = arith.divf %252, %253 : vector<16x1xf32>
      %255 = vector.broadcast %247 : vector<16x1xf32> to vector<16x32xf32>
      %256 = arith.subf %237, %255 : vector<16x32xf32>
      %cst_96 = arith.constant 9.99999974E-6 : f32
      %257 = vector.broadcast %cst_96 : f32 to vector<16x1xf32>
      %258 = arith.addf %254, %257 : vector<16x1xf32>
      %259 = math.rsqrt %258 : vector<16x1xf32>
      %260 = vector.broadcast %259 : vector<16x1xf32> to vector<16x32xf32>
      %261 = arith.mulf %256, %260 : vector<16x32xf32>
      %262 = vector.broadcast %242 : vector<1x32xf32> to vector<16x32xf32>
      %263 = arith.mulf %261, %262 : vector<16x32xf32>
      %264 = vector.broadcast %243 : vector<1x32xf32> to vector<16x32xf32>
      %265 = arith.addf %263, %264 : vector<16x32xf32>
      %266 = arith.truncf %265 : vector<16x32xf32> to vector<16x32xbf16>
      %c0_97 = arith.constant 0 : index
      %c0_98 = arith.constant 0 : index
      %267 = vector.load %arg11[%c0_97, %c0_98] : memref<32x128xbf16, #tpu.memory_space<vmem>>, vector<32x128xbf16>
      %cst_99 = arith.constant dense<0.000000e+00> : vector<16x128xf32>
      %268 = tpu.matmul %266, %267, %cst_99 {dimension_numbers = #tpu.dot_dimension_numbers<[1], [0], [0], [1], [0, 0, 1, 1], [], []>} : vector<16x32xbf16>, vector<32x128xbf16>, vector<16x128xf32> -> vector<16x128xf32>
      %c0_100 = arith.constant 0 : index
      %c0_101 = arith.constant 0 : index
      %269 = vector.load %arg12[%c0_100, %c0_101] : memref<16x128xf32, #tpu.memory_space<vmem>>, vector<16x128xf32>
      tpu.vector_store %arg12[%c0_100, %c0_101], %268 {strides = array<i32>} : memref<16x128xf32, #tpu.memory_space<vmem>>, vector<16x128xf32>,
    } else {
    }
    return
  }
  func.func @transform_0(%arg0: i32, %arg1: i32) -> (i32, i32) {
    %c0_i32 = arith.constant 0 : i32
    %c0_i32_0 = arith.constant 0 : i32
    return %arg0, %c0_i32 : i32, i32
  }
  func.func @transform_1(%arg0: i32, %arg1: i32) -> (i32, i32, i32) {
    %c0_i32 = arith.constant 0 : i32
    %c0_i32_0 = arith.constant 0 : i32
    %c0_i32_1 = arith.constant 0 : i32
    return %arg1, %c0_i32, %c0_i32_0 : i32, i32, i32
  }
  func.func @transform_2(%arg0: i32, %arg1: i32) -> (i32, i32, i32) {
    %c0_i32 = arith.constant 0 : i32
    %c0_i32_0 = arith.constant 0 : i32
    %c0_i32_1 = arith.constant 0 : i32
    return %arg1, %c0_i32, %c0_i32_0 : i32, i32, i32
  }
  func.func @transform_3(%arg0: i32, %arg1: i32) -> (i32, i32, i32) {
    %c0_i32 = arith.constant 0 : i32
    %c0_i32_0 = arith.constant 0 : i32
    %c0_i32_1 = arith.constant 0 : i32
    return %arg1, %c0_i32, %c0_i32_0 : i32, i32, i32
  }
  func.func @transform_4(%arg0: i32, %arg1: i32) -> (i32, i32, i32) {
    %c0_i32 = arith.constant 0 : i32
    %c0_i32_0 = arith.constant 0 : i32
    %c0_i32_1 = arith.constant 0 : i32
    return %arg1, %c0_i32, %c0_i32_0 : i32, i32, i32
  }
  func.func @transform_5(%arg0: i32, %arg1: i32) -> (i32, i32, i32) {
    %c0_i32 = arith.constant 0 : i32
    %c0_i32_0 = arith.constant 0 : i32
    %c0_i32_1 = arith.constant 0 : i32
    return %arg1, %c0_i32, %c0_i32_0 : i32, i32, i32
  }
  func.func @transform_6(%arg0: i32, %arg1: i32) -> (i32, i32, i32) {
    %c0_i32 = arith.constant 0 : i32
    %c0_i32_0 = arith.constant 0 : i32
    %c0_i32_1 = arith.constant 0 : i32
    return %arg1, %c0_i32, %c0_i32_0 : i32, i32, i32
  }
  func.func @transform_7(%arg0: i32, %arg1: i32) -> (i32, i32, i32) {
    %c0_i32 = arith.constant 0 : i32
    %c0_i32_0 = arith.constant 0 : i32
    %c0_i32_1 = arith.constant 0 : i32
    return %arg1, %c0_i32, %c0_i32_0 : i32, i32, i32
  }
  func.func @transform_8(%arg0: i32, %arg1: i32) -> (i32, i32) {
    %c0_i32 = arith.constant 0 : i32
    %c0_i32_0 = arith.constant 0 : i32
    %c0_i32_1 = arith.constant 0 : i32
    return %c0_i32, %c0_i32_0 : i32, i32
  }
  func.func @transform_9(%arg0: i32, %arg1: i32) -> (i32, i32) {
    %c0_i32 = arith.constant 0 : i32
    %c0_i32_0 = arith.constant 0 : i32
    %c0_i32_1 = arith.constant 0 : i32
    return %c0_i32, %c0_i32_0 : i32, i32
  }
  func.func @transform_10(%arg0: i32, %arg1: i32) -> (i32, i32) {
    %c0_i32 = arith.constant 0 : i32
    %c0_i32_0 = arith.constant 0 : i32
    return %arg0, %c0_i32 : i32, i32
  }
}

</mosaic_0001>

<llo_original>
// kernel: _lambda_.1
$region0: #{_lambda_.1}
  #allocation0 [shape = 'u32[]', space=smem, size = 0x4, offset = 0x4, fixed_abs, tag = 'smem constant byte address 0x4 - core index']
  #allocation1 [shape = 'u32[144,128]{1,0:T(1,128)}', space=vmem, size = 0x12000, scoped, tag = 'internal scratch']
  #allocation2 [shape = 'f32[16,32]{1,0:T(8,128)}', space=vmem, size = 0x2000, scoped, tag = 'scratch operand']
  #allocation3 [shape = 'bf16[16,32]{1,0:T(8,128)(2,1)}', space=vmem, size = 0x1000, scoped, tag = 'scratch operand']
  %s0 = inlined_call_operand.vmem [shape: f32[32,32], index: 0, kind: input, shape index: {}]
  %s1 = inlined_call_operand.vmem [shape: bf16[2,32,96], index: 1, kind: input, shape index: {}]
  %s2 = inlined_call_operand.vmem [shape: f32[2,1,96], index: 2, kind: input, shape index: {}]
  %s3 = inlined_call_operand.vmem [shape: bf16[2,32,32], index: 3, kind: input, shape index: {}]
  %s4 = inlined_call_operand.vmem [shape: bf16[2,32,64], index: 4, kind: input, shape index: {}]
  %s5 = inlined_call_operand.vmem [shape: f32[2,1,64], index: 5, kind: input, shape index: {}]
  %s6 = inlined_call_operand.vmem [shape: bf16[2,64,32], index: 6, kind: input, shape index: {}]
  %s7 = inlined_call_operand.vmem [shape: f32[2,9,32], index: 7, kind: input, shape index: {}]
  %s8 = inlined_call_operand.vmem [shape: f32[2,32], index: 8, kind: input, shape index: {}]
  %s9 = inlined_call_operand.vmem [shape: bf16[32,128], index: 9, kind: input, shape index: {}]
  %s10 = inlined_call_operand.hbm [shape: f32[32,128], index: 10, kind: output, shape index: {}]
  %s11 = sld [smem:[#allocation0]]
  $region81: #{_lambda_.1} parent=0
    _
  %s13 = ssub.s32 1, %s11
  %s14 = scalar_select 0, %s13, %s11
  $region1: #{_lambda_.1} parent=0
    #allocation4 [shape = 'u8[16384]{0}', space=vmem, size = 0x4000, scoped, tag = 'output window, operand 0']
    #allocation5 [shape = 's32[2]{0}', space=sflag, size = 0x8, scoped, tag = 'scoped memory for _lambda_.1']
    %15 = vsyncpa [#allocation5], 0
    %s16 = scalar_lea.sflag [#allocation5], 1
    %17 = vsyncpa %s16, 0
    loop: start=0, step=1, limit=6
    $region2: #{_lambda_.1} parent=1 // loop_pre_header
      _
    $region3: #{_lambda_.1} parent=1 // loop_header
      %s19 = sphi 0, %s23
      %p20 = scmp.ge.s32.totalorder %s19, 6
      %s26 = sphi 0, %s38
      %s27 = sphi 0, %s34
      %s28 = sphi 0, %s26
      %s29 = sphi 0, %s27
      %s30 = sphi 0, %s28
      %s31 = sphi 0, %s29
      %s41 = sphi 0, %s43
      %s44 = sphi 0, %s41
      %s45 = sphi 0, %s44
      %s61 = sphi 0, %s45
      %s67 = sphi 0, %s69
      %s70 = sphi 0, %s67
      %s71 = sphi 0, %s70
      %s87 = sphi 0, %s71
      %s93 = sphi 0, %s95
      %s96 = sphi 0, %s93
      %s97 = sphi 0, %s96
      %s113 = sphi 0, %s97
      %s119 = sphi 0, %s121
      %s122 = sphi 0, %s119
      %s123 = sphi 0, %s122
      %s139 = sphi 0, %s123
      %s145 = sphi 0, %s147
      %s148 = sphi 0, %s145
      %s149 = sphi 0, %s148
      %s165 = sphi 0, %s149
      %s171 = sphi 0, %s173
      %s174 = sphi 0, %s171
      %s175 = sphi 0, %s174
      %s191 = sphi 0, %s175
      %s197 = sphi 0, %s199
      %s200 = sphi 0, %s197
      %s201 = sphi 0, %s200
      %s217 = sphi 0, %s201
      %s223 = sphi 0, %s225
      %s226 = sphi 0, %s223
      %s227 = sphi 0, %s226
      %s243 = sphi 0, %s227
      %s247 = sphi 0, %s247
      %s249 = sphi 0, %s247
      %s250 = sphi 0, %s249
      %s264 = sphi 0, %s250
      %s268 = sphi 0, %s268
      %s270 = sphi 0, %s268
      %s271 = sphi 0, %s270
      %s285 = sphi 0, %s271
      %s291 = sphi 0, %s293
      %s294 = sphi 0, %s291
      %s295 = sphi 0, %s294
      %s311 = sphi 0, %s295
    $region4: #{_lambda_.1} parent=1 // loop_header_branch
      %22 = sbr.rel (%p20) target = $region8
    $region5: #{_lambda_.1} parent=1 // loop_body
      %s24 = ssub.s32 %s19, 1
      %s25 = ssub.s32 %s19, 2
      %s32 = sadd.s32 1, %s27
      %p33 = scmp.ge.s32.totalorder %s32, 2
      %s34 = scalar_select %p33, 0, %s32
      %s35 = sadd.s32 1, %s26
      %s36 = scalar_select %p33, %s35, %s26
      %p37 = scmp.ge.s32.totalorder %s36, 2
      %s38 = scalar_select %p37, 0, %s36
      %s39 = ssub.s32 %s26, %s38
      %p40 = scmp.eq.s32.totalorder %s39, 0
      %s42 = sadd.s32 %s41, 1
      %s43 = scalar_select %p40, %s41, %s42
      %p46 = pneg %p40
      %p47 = scmp.eq.s32.totalorder %s19, 3
      %p48 = por %p46, %p47
      %p49 = scmp.ne.s32.totalorder %s41, %s44
      %p50 = scmp.eq.s32.totalorder %s19, 0
      %p51 = por %p49, %p50
      %p52 = scmp.ne.s32.totalorder %s41, %s44
      %p53 = scmp.eq.s32.totalorder %s24, 3
      %p54 = por %p52, %p53
      %p55 = scmp.ne.s32.totalorder %s44, %s45
      %p56 = scmp.eq.s32.totalorder %s24, 0
      %p57 = por %p55, %p56
      %p58 = scmp.ne.s32.totalorder %s44, %s45
      %p59 = scmp.eq.s32.totalorder %s25, 3
      %p60 = por %p58, %p59
      %p62 = scmp.ne.s32.totalorder %s45, %s61
      %p63 = scmp.eq.s32.totalorder %s25, 0
      %p64 = por %p62, %p63
      %s65 = ssub.s32 %s27, %s34
      %p66 = scmp.eq.s32.totalorder %s65, 0
      %s68 = sadd.s32 %s67, 1
      %s69 = scalar_select %p66, %s67, %s68
      %p72 = pneg %p66
      %p73 = scmp.eq.s32.totalorder %s19, 3
      %p74 = por %p72, %p73
      %p75 = scmp.ne.s32.totalorder %s67, %s70
      %p76 = scmp.eq.s32.totalorder %s19, 0
      %p77 = por %p75, %p76
      %p78 = scmp.ne.s32.totalorder %s67, %s70
      %p79 = scmp.eq.s32.totalorder %s24, 3
      %p80 = por %p78, %p79
      %p81 = scmp.ne.s32.totalorder %s70, %s71
      %p82 = scmp.eq.s32.totalorder %s24, 0
      %p83 = por %p81, %p82
      %p84 = scmp.ne.s32.totalorder %s70, %s71
      %p85 = scmp.eq.s32.totalorder %s25, 3
      %p86 = por %p84, %p85
      %p88 = scmp.ne.s32.totalorder %s71, %s87
      %p89 = scmp.eq.s32.totalorder %s25, 0
      %p90 = por %p88, %p89
      %s91 = ssub.s32 %s27, %s34
      %p92 = scmp.eq.s32.totalorder %s91, 0
      %s94 = sadd.s32 %s93, 1
      %s95 = scalar_select %p92, %s93, %s94
      %p98 = pneg %p92
      %p99 = scmp.eq.s32.totalorder %s19, 3
      %p100 = por %p98, %p99
      %p101 = scmp.ne.s32.totalorder %s93, %s96
      %p102 = scmp.eq.s32.totalorder %s19, 0
      %p103 = por %p101, %p102
      %p104 = scmp.ne.s32.totalorder %s93, %s96
      %p105 = scmp.eq.s32.totalorder %s24, 3
      %p106 = por %p104, %p105
      %p107 = scmp.ne.s32.totalorder %s96, %s97
      %p108 = scmp.eq.s32.totalorder %s24, 0
      %p109 = por %p107, %p108
      %p110 = scmp.ne.s32.totalorder %s96, %s97
      %p111 = scmp.eq.s32.totalorder %s25, 3
      %p112 = por %p110, %p111
      %p114 = scmp.ne.s32.totalorder %s97, %s113
      %p115 = scmp.eq.s32.totalorder %s25, 0
      %p116 = por %p114, %p115
      %s117 = ssub.s32 %s27, %s34
      %p118 = scmp.eq.s32.totalorder %s117, 0
      %s120 = sadd.s32 %s119, 1
      %s121 = scalar_select %p118, %s119, %s120
      %p124 = pneg %p118
      %p125 = scmp.eq.s32.totalorder %s19, 3
      %p126 = por %p124, %p125
      %p127 = scmp.ne.s32.totalorder %s119, %s122
      %p128 = scmp.eq.s32.totalorder %s19, 0
      %p129 = por %p127, %p128
      %p130 = scmp.ne.s32.totalorder %s119, %s122
      %p131 = scmp.eq.s32.totalorder %s24, 3
      %p132 = por %p130, %p131
      %p133 = scmp.ne.s32.totalorder %s122, %s123
      %p134 = scmp.eq.s32.totalorder %s24, 0
      %p135 = por %p133, %p134
      %p136 = scmp.ne.s32.totalorder %s122, %s123
      %p137 = scmp.eq.s32.totalorder %s25, 3
      %p138 = por %p136, %p137
      %p140 = scmp.ne.s32.totalorder %s123, %s139
      %p141 = scmp.eq.s32.totalorder %s25, 0
      %p142 = por %p140, %p141
      %s143 = ssub.s32 %s27, %s34
      %p144 = scmp.eq.s32.totalorder %s143, 0
      %s146 = sadd.s32 %s145, 1
      %s147 = scalar_select %p144, %s145, %s146
      %p150 = pneg %p144
      %p151 = scmp.eq.s32.totalorder %s19, 3
      %p152 = por %p150, %p151
      %p153 = scmp.ne.s32.totalorder %s145, %s148
      %p154 = scmp.eq.s32.totalorder %s19, 0
      %p155 = por %p153, %p154
      %p156 = scmp.ne.s32.totalorder %s145, %s148
      %p157 = scmp.eq.s32.totalorder %s24, 3
      %p158 = por %p156, %p157
      %p159 = scmp.ne.s32.totalorder %s148, %s149
      %p160 = scmp.eq.s32.totalorder %s24, 0
      %p161 = por %p159, %p160
      %p162 = scmp.ne.s32.totalorder %s148, %s149
      %p163 = scmp.eq.s32.totalorder %s25, 3
      %p164 = por %p162, %p163
      %p166 = scmp.ne.s32.totalorder %s149, %s165
      %p167 = scmp.eq.s32.totalorder %s25, 0
      %p168 = por %p166, %p167
      %s169 = ssub.s32 %s27, %s34
      %p170 = scmp.eq.s32.totalorder %s169, 0
      %s172 = sadd.s32 %s171, 1
      %s173 = scalar_select %p170, %s171, %s172
      %p176 = pneg %p170
      %p177 = scmp.eq.s32.totalorder %s19, 3
      %p178 = por %p176, %p177
      %p179 = scmp.ne.s32.totalorder %s171, %s174
      %p180 = scmp.eq.s32.totalorder %s19, 0
      %p181 = por %p179, %p180
      %p182 = scmp.ne.s32.totalorder %s171, %s174
      %p183 = scmp.eq.s32.totalorder %s24, 3
      %p184 = por %p182, %p183
      %p185 = scmp.ne.s32.totalorder %s174, %s175
      %p186 = scmp.eq.s32.totalorder %s24, 0
      %p187 = por %p185, %p186
      %p188 = scmp.ne.s32.totalorder %s174, %s175
      %p189 = scmp.eq.s32.totalorder %s25, 3
      %p190 = por %p188, %p189
      %p192 = scmp.ne.s32.totalorder %s175, %s191
      %p193 = scmp.eq.s32.totalorder %s25, 0
      %p194 = por %p192, %p193
      %s195 = ssub.s32 %s27, %s34
      %p196 = scmp.eq.s32.totalorder %s195, 0
      %s198 = sadd.s32 %s197, 1
      %s199 = scalar_select %p196, %s197, %s198
      %p202 = pneg %p196
      %p203 = scmp.eq.s32.totalorder %s19, 3
      %p204 = por %p202, %p203
      %p205 = scmp.ne.s32.totalorder %s197, %s200
      %p206 = scmp.eq.s32.totalorder %s19, 0
      %p207 = por %p205, %p206
      %p208 = scmp.ne.s32.totalorder %s197, %s200
      %p209 = scmp.eq.s32.totalorder %s24, 3
      %p210 = por %p208, %p209
      %p211 = scmp.ne.s32.totalorder %s200, %s201
      %p212 = scmp.eq.s32.totalorder %s24, 0
      %p213 = por %p211, %p212
      %p214 = scmp.ne.s32.totalorder %s200, %s201
      %p215 = scmp.eq.s32.totalorder %s25, 3
      %p216 = por %p214, %p215
      %p218 = scmp.ne.s32.totalorder %s201, %s217
      %p219 = scmp.eq.s32.totalorder %s25, 0
      %p220 = por %p218, %p219
      %s221 = ssub.s32 %s27, %s34
      %p222 = scmp.eq.s32.totalorder %s221, 0
      %s224 = sadd.s32 %s223, 1
      %s225 = scalar_select %p222, %s223, %s224
      %p228 = pneg %p222
      %p229 = scmp.eq.s32.totalorder %s19, 3
      %p230 = por %p228, %p229
      %p231 = scmp.ne.s32.totalorder %s223, %s226
      %p232 = scmp.eq.s32.totalorder %s19, 0
      %p233 = por %p231, %p232
      %p234 = scmp.ne.s32.totalorder %s223, %s226
      %p235 = scmp.eq.s32.totalorder %s24, 3
      %p236 = por %p234, %p235
      %p237 = scmp.ne.s32.totalorder %s226, %s227
      %p238 = scmp.eq.s32.totalorder %s24, 0
      %p239 = por %p237, %p238
      %p240 = scmp.ne.s32.totalorder %s226, %s227
      %p241 = scmp.eq.s32.totalorder %s25, 3
      %p242 = por %p240, %p241
      %p244 = scmp.ne.s32.totalorder %s227, %s243
      %p245 = scmp.eq.s32.totalorder %s25, 0
      %p246 = por %p244, %p245
      %s248 = sadd.s32 %s247, 1
      %p251 = scmp.eq.s32.totalorder %s19, 3
      %p252 = scmp.ne.s32.totalorder %s247, %s249
      %p253 = scmp.eq.s32.totalorder %s19, 0
      %p254 = por %p252, %p253
      %p255 = scmp.ne.s32.totalorder %s247, %s249
      %p256 = scmp.eq.s32.totalorder %s24, 3
      %p257 = por %p255, %p256
      %p258 = scmp.ne.s32.totalorder %s249, %s250
      %p259 = scmp.eq.s32.totalorder %s24, 0
      %p260 = por %p258, %p259
      %p261 = scmp.ne.s32.totalorder %s249, %s250
      %p262 = scmp.eq.s32.totalorder %s25, 3
      %p263 = por %p261, %p262
      %p265 = scmp.ne.s32.totalorder %s250, %s264
      %p266 = scmp.eq.s32.totalorder %s25, 0
      %p267 = por %p265, %p266
      %s269 = sadd.s32 %s268, 1
      %p272 = scmp.eq.s32.totalorder %s19, 3
      %p273 = scmp.ne.s32.totalorder %s268, %s270
      %p274 = scmp.eq.s32.totalorder %s19, 0
      %p275 = por %p273, %p274
      %p276 = scmp.ne.s32.totalorder %s268, %s270
      %p277 = scmp.eq.s32.totalorder %s24, 3
      %p278 = por %p276, %p277
      %p279 = scmp.ne.s32.totalorder %s270, %s271
      %p280 = scmp.eq.s32.totalorder %s24, 0
      %p281 = por %p279, %p280
      %p282 = scmp.ne.s32.totalorder %s270, %s271
      %p283 = scmp.eq.s32.totalorder %s25, 3
      %p284 = por %p282, %p283
      %p286 = scmp.ne.s32.totalorder %s271, %s285
      %p287 = scmp.eq.s32.totalorder %s25, 0
      %p288 = por %p286, %p287
      %s289 = ssub.s32 %s26, %s38
      %p290 = scmp.eq.s32.totalorder %s289, 0
      %s292 = sadd.s32 %s291, 1
      %s293 = scalar_select %p290, %s291, %s292
      %p296 = pneg %p290
      %p297 = scmp.eq.s32.totalorder %s19, 3
      %p298 = por %p296, %p297
      %p299 = scmp.ne.s32.totalorder %s291, %s294
      %p300 = scmp.eq.s32.totalorder %s19, 0
      %p301 = por %p299, %p300
      %p302 = scmp.ne.s32.totalorder %s291, %s294
      %p303 = scmp.eq.s32.totalorder %s24, 3
      %p304 = por %p302, %p303
      %p305 = scmp.ne.s32.totalorder %s294, %s295
      %p306 = scmp.eq.s32.totalorder %s24, 0
      %p307 = por %p305, %p306
      %p308 = scmp.ne.s32.totalorder %s294, %s295
      %p309 = scmp.eq.s32.totalorder %s25, 3
      %p310 = por %p308, %p309
      %p312 = scmp.ne.s32.totalorder %s295, %s311
      %p313 = scmp.eq.s32.totalorder %s25, 0
      %p314 = por %p312, %p313
      %p315 = scmp.le.s32.totalorder 1, %s19
      %p316 = scmp.lt.s32.totalorder %s19, 5
      %p317 = pnand %p315, %p316
      %p318 = pneg %p317
      // Predicated region
      $region9: #{_lambda_.1} parent=5 // pred_check
        _
      $region10: #{_lambda_.1} parent=5 // pred_check_branch
        %320 = sbr.rel (%p317) target = $region12
      $region11: #{_lambda_.1} parent=5 // pred_region
        %s321 = ssub.s32 %s19, 1
        // Predicated region
        $region13: #{_lambda_.1} parent=11 // pred_check
          %p322 = pneg %p260
        $region14: #{_lambda_.1} parent=11 // pred_check_branch
          %324 = sbr.rel (%p322) target = $region16
        $region15: #{_lambda_.1} parent=11 // pred_region
          _
        $region16: #{_lambda_.1} parent=11 // pred_fallthru
          _
        // Predicated region
        $region17: #{_lambda_.1} parent=11 // pred_check
          %p325 = pneg %p281
        $region18: #{_lambda_.1} parent=11 // pred_check_branch
          %327 = sbr.rel (%p325) target = $region20
        $region19: #{_lambda_.1} parent=11 // pred_region
          _
        $region20: #{_lambda_.1} parent=11 // pred_fallthru
          _
      $region12: #{_lambda_.1} parent=5 // pred_fallthru
        _
      %p328 = scmp.lt.s32.totalorder %s19, 4
      // Predicated region
      $region21: #{_lambda_.1} parent=5 // pred_check
        %p329 = pneg %p328
      $region22: #{_lambda_.1} parent=5 // pred_check_branch
        %331 = sbr.rel (%p329) target = $region24
      $region23: #{_lambda_.1} parent=5 // pred_region
        // Predicated region
        $region25: #{_lambda_.1} parent=23 // pred_check
          %p332 = pneg %p51
        $region26: #{_lambda_.1} parent=23 // pred_check_branch
          %334 = sbr.rel (%p332) target = $region28
        $region27: #{_lambda_.1} parent=23 // pred_region
          %s335 = smul.u32 2, %s26
          %p336 = scmp.lt.s32.totalorder %s335, 3
          %s337 = scalar_select %p336, %s335, 3
          %s338 = smul.addr %s337, 8
          %s339 = scalar_lea.vmem %s0, %s338
          %s340 = smul.u32 2, %s26
        $region28: #{_lambda_.1} parent=23 // pred_fallthru
          _
        // Predicated region
        $region29: #{_lambda_.1} parent=23 // pred_check
          %p341 = pneg %p77
        $region30: #{_lambda_.1} parent=23 // pred_check_branch
          %343 = sbr.rel (%p341) target = $region32
        $region31: #{_lambda_.1} parent=23 // pred_region
          %p344 = scmp.lt.s32.totalorder %s27, 1
          %s345 = scalar_select %p344, %s27, 1
          %s346 = smul.addr %s345, 4
          %s347 = smul.addr %s346, 4
          %s348 = scalar_lea.vmem %s1, %s347
        $region32: #{_lambda_.1} parent=23 // pred_fallthru
          _
        // Predicated region
        $region33: #{_lambda_.1} parent=23 // pred_check
          %p349 = pneg %p103
        $region34: #{_lambda_.1} parent=23 // pred_check_branch
          %351 = sbr.rel (%p349) target = $region36
        $region35: #{_lambda_.1} parent=23 // pred_region
          %p352 = scmp.lt.s32.totalorder %s27, 1
          %s353 = scalar_select %p352, %s27, 1
          %s354 = scalar_lea.vmem %s2, %s353
        $region36: #{_lambda_.1} parent=23 // pred_fallthru
          _
        // Predicated region
        $region37: #{_lambda_.1} parent=23 // pred_check
          %p355 = pneg %p129
        $region38: #{_lambda_.1} parent=23 // pred_check_branch
          %357 = sbr.rel (%p355) target = $region40
        $region39: #{_lambda_.1} parent=23 // pred_region
          %p358 = scmp.lt.s32.totalorder %s27, 1
          %s359 = scalar_select %p358, %s27, 1
          %s360 = smul.addr %s359, 4
          %s361 = smul.addr %s360, 4
          %s362 = scalar_lea.vmem %s3, %s361
        $region40: #{_lambda_.1} parent=23 // pred_fallthru
          _
        // Predicated region
        $region41: #{_lambda_.1} parent=23 // pred_check
          %p363 = pneg %p155
        $region42: #{_lambda_.1} parent=23 // pred_check_branch
          %365 = sbr.rel (%p363) target = $region44
        $region43: #{_lambda_.1} parent=23 // pred_region
          %p366 = scmp.lt.s32.totalorder %s27, 1
          %s367 = scalar_select %p366, %s27, 1
          %s368 = smul.addr %s367, 4
          %s369 = smul.addr %s368, 4
          %s370 = scalar_lea.vmem %s4, %s369
        $region44: #{_lambda_.1} parent=23 // pred_fallthru
          _
        // Predicated region
        $region45: #{_lambda_.1} parent=23 // pred_check
          %p371 = pneg %p181
        $region46: #{_lambda_.1} parent=23 // pred_check_branch
          %373 = sbr.rel (%p371) target = $region48
        $region47: #{_lambda_.1} parent=23 // pred_region
          %p374 = scmp.lt.s32.totalorder %s27, 1
          %s375 = scalar_select %p374, %s27, 1
          %s376 = scalar_lea.vmem %s5, %s375
        $region48: #{_lambda_.1} parent=23 // pred_fallthru
          _
        // Predicated region
        $region49: #{_lambda_.1} parent=23 // pred_check
          %p377 = pneg %p207
        $region50: #{_lambda_.1} parent=23 // pred_check_branch
          %379 = sbr.rel (%p377) target = $region52
        $region51: #{_lambda_.1} parent=23 // pred_region
          %p380 = scmp.lt.s32.totalorder %s27, 1
          %s381 = scalar_select %p380, %s27, 1
          %s382 = smul.addr %s381, 8
          %s383 = smul.addr %s382, 4
          %s384 = scalar_lea.vmem %s6, %s383
        $region52: #{_lambda_.1} parent=23 // pred_fallthru
          _
        // Predicated region
        $region53: #{_lambda_.1} parent=23 // pred_check
          %p385 = pneg %p233
        $region54: #{_lambda_.1} parent=23 // pred_check_branch
          %387 = sbr.rel (%p385) target = $region56
        $region55: #{_lambda_.1} parent=23 // pred_region
          %p388 = scmp.lt.s32.totalorder %s27, 1
          %s389 = scalar_select %p388, %s27, 1
          %s390 = smul.addr %s389, 2
          %s391 = smul.addr %s390, 8
          %s392 = scalar_lea.vmem %s7, %s391
        $region56: #{_lambda_.1} parent=23 // pred_fallthru
          _
      $region24: #{_lambda_.1} parent=5 // pred_fallthru
        _
      %p393 = scmp.le.s32.totalorder 1, %s19
      %p394 = scmp.lt.s32.totalorder %s19, 5
      %p395 = pnand %p393, %p394
      %p396 = pneg %p395
      // Predicated region
      $region57: #{_lambda_.1} parent=5 // pred_check
        _
      $region58: #{_lambda_.1} parent=5 // pred_check_branch
        %398 = sbr.rel (%p395) target = $region60
      $region59: #{_lambda_.1} parent=5 // pred_region
        %s399 = ssub.s32 %s19, 1
        %s400 = smul.u32 2, %s28
        %p401 = scmp.lt.s32.totalorder %s400, 3
        %s402 = scalar_select %p401, %s400, 3
        %s403 = smul.addr %s402, 8
        %s404 = scalar_lea.vmem %s0, %s403
        %p405 = pneg %p57
        %p406 = pneg %p54
        %p407 = scmp.lt.s32.totalorder %s29, 1
        %s408 = scalar_select %p407, %s29, 1
        %s409 = smul.addr %s408, 4
        %s410 = smul.addr %s409, 4
        %s411 = scalar_lea.vmem %s1, %s410
        %p412 = pneg %p83
        %p413 = pneg %p80
        %p414 = scmp.lt.s32.totalorder %s29, 1
        %s415 = scalar_select %p414, %s29, 1
        %s416 = scalar_lea.vmem %s2, %s415
        %p417 = pneg %p109
        %p418 = pneg %p106
        %p419 = scmp.lt.s32.totalorder %s29, 1
        %s420 = scalar_select %p419, %s29, 1
        %s421 = smul.addr %s420, 4
        %s422 = smul.addr %s421, 4
        %s423 = scalar_lea.vmem %s3, %s422
        %p424 = pneg %p135
        %p425 = pneg %p132
        %p426 = scmp.lt.s32.totalorder %s29, 1
        %s427 = scalar_select %p426, %s29, 1
        %s428 = smul.addr %s427, 4
        %s429 = smul.addr %s428, 4
        %s430 = scalar_lea.vmem %s4, %s429
        %p431 = pneg %p161
        %p432 = pneg %p158
        %p433 = scmp.lt.s32.totalorder %s29, 1
        %s434 = scalar_select %p433, %s29, 1
        %s435 = scalar_lea.vmem %s5, %s434
        %p436 = pneg %p187
        %p437 = pneg %p184
        %p438 = scmp.lt.s32.totalorder %s29, 1
        %s439 = scalar_select %p438, %s29, 1
        %s440 = smul.addr %s439, 8
        %s441 = smul.addr %s440, 4
        %s442 = scalar_lea.vmem %s6, %s441
        %p443 = pneg %p213
        %p444 = pneg %p210
        %p445 = scmp.lt.s32.totalorder %s29, 1
        %s446 = scalar_select %p445, %s29, 1
        %s447 = smul.addr %s446, 2
        %s448 = smul.addr %s447, 8
        %s449 = scalar_lea.vmem %s7, %s448
        %p450 = pneg %p239
        %p451 = pneg %p236
        %p452 = pneg %p260
        %p453 = pneg %p257
        %p454 = pneg %p281
        %p455 = pneg %p278
        %p456 = pneg %p307
        %p457 = pneg %p304
        %s458 = sand.u32 %s294, 1
        %s459 = scalar_lea.sflag [#allocation5], %s458
        %s460 = sand.u32 %s294, 1
        %s461 = smul.addr %s460, 16
        %s462 = scalar_lea.vmem [#allocation4], %s461
        %s463 = smul.u32 2, %s28
        %p464 = scmp.lt.s32.totalorder %s463, 3
        %s465 = scalar_select %p464, %s463, 3
        %s466 = smul.addr %s465, 8
        %s467 = scalar_lea.vmem %s0, %s466
        %s468 = smul.u32 2, %s28
        %p469 = scmp.lt.s32.totalorder %s29, 1
        %s470 = scalar_select %p469, %s29, 1
        %s471 = smul.addr %s470, 4
        %s472 = smul.addr %s471, 4
        %s473 = scalar_lea.vmem %s1, %s472
        %p474 = scmp.lt.s32.totalorder %s29, 1
        %s475 = scalar_select %p474, %s29, 1
        %s476 = scalar_lea.vmem %s2, %s475
        %p477 = scmp.lt.s32.totalorder %s29, 1
        %s478 = scalar_select %p477, %s29, 1
        %s479 = smul.addr %s478, 4
        %s480 = smul.addr %s479, 4
        %s481 = scalar_lea.vmem %s3, %s480
        %p482 = scmp.lt.s32.totalorder %s29, 1
        %s483 = scalar_select %p482, %s29, 1
        %s484 = smul.addr %s483, 4
        %s485 = smul.addr %s484, 4
        %s486 = scalar_lea.vmem %s4, %s485
        %p487 = scmp.lt.s32.totalorder %s29, 1
        %s488 = scalar_select %p487, %s29, 1
        %s489 = scalar_lea.vmem %s5, %s488
        %p490 = scmp.lt.s32.totalorder %s29, 1
        %s491 = scalar_select %p490, %s29, 1
        %s492 = smul.addr %s491, 8
        %s493 = smul.addr %s492, 4
        %s494 = scalar_lea.vmem %s6, %s493
        %p495 = scmp.lt.s32.totalorder %s29, 1
        %s496 = scalar_select %p495, %s29, 1
        %s497 = smul.addr %s496, 2
        %s498 = smul.addr %s497, 8
        %s499 = scalar_lea.vmem %s7, %s498
        %s500 = smul.u32 2, %s28
        %p502 = scmp.eq.s32.totalorder %s29, 0
        // Predicated region
        $region61: #{_lambda_.1} parent=59 // pred_check
          %p503 = pneg %p502
        $region62: #{_lambda_.1} parent=59 // pred_check_branch
          %505 = sbr.rel (%p503) target = $region64
        $region63: #{_lambda_.1} parent=59 // pred_region
          %v506 = vld [vmem:[%s467] sm:$0xff]
          %v507 = vld [vmem:[%s467 + $0x8] sm:$0xff]
          %vm508 = vcmask 261120
          %509 = vst.msk [vmem:[#allocation2] sm:$0xff] %vm508, %v506
          %510 = vst.msk [vmem:[#allocation2 + $0x8] sm:$0xff] %vm508, %v507
        $region64: #{_lambda_.1} parent=59 // pred_fallthru
          _
        %v511 = vld [vmem:[#allocation2] sm:$0xff]
        %v512 = vld [vmem:[#allocation2 + $0x8] sm:$0xff]
        %v513 = vld [vmem:[%s499] sm:$0xff]
        %v514 = vld [vmem:[%s499 + $0x8] sm:$0x1]
        %v515 = vpack.c.bf16 %v512, %v511
        %v516 = vld [vmem:[%s473] sm:$0xf]
        %v517 = vld [vmem:[%s473 + $0x4] sm:$0xf]
        %v518 = vld [vmem:[%s473 + $0x8] sm:$0xf]
        %v519 = vld [vmem:[%s473 + $0xc] sm:$0xf]
        %v520 = vld [vmem:[%s476] sm:$0x1]
        %v522 = vlaneseq
        %v523 = vshrl.u32 %v522, 7
        %v524 = vsub.s32 0, %v523
        %v525 = vrot.slane %v520, %v524
        %v531 = vunpack.c.l.b16 %v516
        %v532 = vunpack.c.l.b16 %v517
        %v533 = vunpack.c.l.b16 %v518
        %v534 = vunpack.c.l.b16 %v519
        %v535 = vpack.c.b16 %v532, %v531
        %v536 = vpack.c.b16 %v534, %v533
        %vm539 = vcmask 261120
        %v541 = vsel %vm539, %v515, 0
        %543 = vmatprep.subr.bf16.mxu0 0
        %544 = vmatpush1.bf16.msra.mxu0 0
        %545 = vmatprep.subr.bf16.mxu0 0
        %546 = vmatpush1.bf16.msra.mxu0 0
        %547 = vmatprep.subr.bf16.mxu0 0
        %548 = vmatpush1.bf16.msra.mxu0 0
        %549 = vmatprep.subr.bf16.mxu0 0
        %550 = vmatpush1.bf16.msra.mxu0 0
        %551 = vmatprep.subr.bf16.mxu0 0
        %552 = vmatpush1.bf16.msra.mxu0 0
        %553 = vmatprep.subr.bf16.mxu0 0
        %554 = vmatpush1.bf16.msra.mxu0 0
        %555 = vmatprep.subr.bf16.mxu0 0
        %556 = vmatpush1.bf16.msra.mxu0 %v536
        %557 = vmatprep.subr.bf16.mxu0 0
        %558 = vmatpush1.bf16.msra.mxu0 %v535
        %559 = vmatprep.subr.bf16.mxu0 0
        %560 = vmatpush2.bf16.msra.mxu0 0
        %561 = vmatprep.subr.bf16.mxu0 0
        %562 = vmatpush2.bf16.msra.mxu0 0
        %563 = vmatprep.subr.bf16.mxu0 0
        %564 = vmatpush2.bf16.msra.mxu0 0
        %565 = vmatprep.subr.bf16.mxu0 0
        %566 = vmatpush2.bf16.msra.mxu0 0
        %567 = vmatprep.subr.bf16.mxu0 0
        %568 = vmatpush2.bf16.msra.mxu0 0
        %569 = vmatprep.subr.bf16.mxu0 0
        %570 = vmatpush2.bf16.msra.mxu0 0
        %571 = vmatprep.subr.bf16.mxu0 0
        %572 = vmatpush2.bf16.msra.mxu0 0
        %573 = vmatprep.subr.bf16.mxu0 0
        %574 = vmatpush2.bf16.msra.mxu0 0
        %575 = vmatprep.mubr.bf16.mxu0 0
        %576 = vmatmul.mubr.bf16.gmra.mxu0 %v541
        %v577 = vpop.f32.mrf.mxu0
        %v578 = vadd.f32 %v525, %v577
        %v579 = vpop.f32.mrf.mxu0
        %v580 = vpop.f32.mrf.mxu0
        %v581 = vadd.f32 %v525, %v580
        %v582 = vpop.f32.mrf.mxu0
        %583 = vdwg.mxu0
        %v584 = vpack.c.bf16 %v581, %v578
        %586 = vrot.lane.b32.xlu0 %v584, 96
        %v587 = vpop.permute.xlu0 %586
        %vm588 = vcmask 130048
        %v590 = vsel %vm588, %v584, 0
        %v593 = vsel %vm588, %v587, 0
        %595 = vmatprep.subr.bf16.mxu0 0
        %596 = vmatpush1.bf16.xpose.msra.mxu0 0
        %597 = vmatprep.subr.bf16.mxu0 0
        %598 = vmatpush1.bf16.xpose.msra.mxu0 0
        %599 = vmatprep.subr.bf16.mxu0 0
        %600 = vmatpush1.bf16.xpose.msra.mxu0 0
        %601 = vmatprep.subr.bf16.mxu0 0
        %602 = vmatpush1.bf16.xpose.msra.mxu0 0
        %603 = vmatprep.subr.bf16.mxu0 0
        %604 = vmatpush1.bf16.xpose.msra.mxu0 0
        %605 = vmatprep.subr.bf16.mxu0 0
        %606 = vmatpush1.bf16.xpose.msra.mxu0 0
        %607 = vmatprep.subr.bf16.mxu0 0
        %608 = vmatpush1.bf16.xpose.msra.mxu0 0
        %609 = vmatprep.subr.bf16.mxu0 0
        %610 = vmatpush1.bf16.xpose.msra.mxu0 %v593
        %611 = vmatprep.subr.bf16.mxu0 0
        %612 = vmatpush2.bf16.xpose.msra.mxu0 0
        %613 = vmatprep.subr.bf16.mxu0 0
        %614 = vmatpush2.bf16.xpose.msra.mxu0 0
        %615 = vmatprep.subr.bf16.mxu0 0
        %616 = vmatpush2.bf16.xpose.msra.mxu0 0
        %617 = vmatprep.subr.bf16.mxu0 0
        %618 = vmatpush2.bf16.xpose.msra.mxu0 0
        %619 = vmatprep.subr.bf16.mxu0 0
        %620 = vmatpush2.bf16.xpose.msra.mxu0 0
        %621 = vmatprep.subr.bf16.mxu0 0
        %622 = vmatpush2.bf16.xpose.msra.mxu0 0
        %623 = vmatprep.subr.bf16.mxu0 0
        %624 = vmatpush2.bf16.xpose.msra.mxu0 0
        %625 = vmatprep.subr.bf16.mxu0 0
        %626 = vmatpush2.bf16.xpose.msra.mxu0 0
        %627 = vmatprep.mubr.bf16.mxu0 0
        %628 = vmatmul.mubr.bf16.gmra.mxu0 %v590
        %v629 = vpop.f32.mrf.mxu0
        %v630 = vadd.f32 0.0, %v629
        %v631 = vpop.f32.mrf.mxu0
        %v632 = vpop.f32.mrf.mxu0
        %v633 = vpop.f32.mrf.mxu0
        %634 = vdwg.mxu0
        %v635 = vmul.f32 %v630, 0.25
        %vm636 = vcmask 64512
        %v637 = vsel %vm636, %v635, -inf
        %638 = vmax.xlane.f32.xlu0 %v637
        %v639 = vpop.xlane.xlu0 %638
        %v640 = vsub.f32 %v635, %v639
        %v641 = vmul.f32 %v640, 1.442695
        %v642 = vpow.pop %v641
        %v643 = vsel %vm636, %v642, 0.0
        %644 = vadd.xlane.f32.xlu0 %v643
        %v645 = vpop.xlane.xlu0 %644
        %v646 = vrcp.pop %v645
        %v647 = vmul.f32 %v642, %v646
        %v648 = vpack.c.bf16 %v647, %v647
        %649 = vrot.lane.b32.xlu0 %v584, 64
        %v650 = vpop.permute.xlu0 %649
        %v652 = vsel %vm636, %v648, 0
        %vm654 = vcmask 1043456
        %v656 = vsel %vm654, %v650, 0
        %658 = vmatprep.subr.bf16.mxu0 0
        %659 = vmatpush1.bf16.msra.mxu0 0
        %660 = vmatprep.subr.bf16.mxu0 0
        %661 = vmatpush1.bf16.msra.mxu0 0
        %662 = vmatprep.subr.bf16.mxu0 0
        %663 = vmatpush1.bf16.msra.mxu0 0
        %664 = vmatprep.subr.bf16.mxu0 0
        %665 = vmatpush1.bf16.msra.mxu0 0
        %666 = vmatprep.subr.bf16.mxu0 0
        %667 = vmatpush1.bf16.msra.mxu0 0
        %668 = vmatprep.subr.bf16.mxu0 0
        %669 = vmatpush1.bf16.msra.mxu0 0
        %670 = vmatprep.subr.bf16.mxu0 0
        %671 = vmatpush1.bf16.msra.mxu0 0
        %672 = vmatprep.subr.bf16.mxu0 0
        %673 = vmatpush1.bf16.msra.mxu0 %v656
        %674 = vmatprep.subr.bf16.mxu0 0
        %675 = vmatpush2.bf16.msra.mxu0 0
        %676 = vmatprep.subr.bf16.mxu0 0
        %677 = vmatpush2.bf16.msra.mxu0 0
        %678 = vmatprep.subr.bf16.mxu0 0
        %679 = vmatpush2.bf16.msra.mxu0 0
        %680 = vmatprep.subr.bf16.mxu0 0
        %681 = vmatpush2.bf16.msra.mxu0 0
        %682 = vmatprep.subr.bf16.mxu0 0
        %683 = vmatpush2.bf16.msra.mxu0 0
        %684 = vmatprep.subr.bf16.mxu0 0
        %685 = vmatpush2.bf16.msra.mxu0 0
        %686 = vmatprep.subr.bf16.mxu0 0
        %687 = vmatpush2.bf16.msra.mxu0 0
        %688 = vmatprep.subr.bf16.mxu0 0
        %689 = vmatpush2.bf16.msra.mxu0 0
        %690 = vmatprep.mubr.bf16.mxu0 0
        %691 = vmatmul.mubr.bf16.gmra.mxu0 %v652
        %v692 = vpop.f32.mrf.mxu0
        %v693 = vadd.f32 0.0, %v692
        %v694 = vpop.f32.mrf.mxu0
        %v695 = vpop.f32.mrf.mxu0
        %v696 = vpop.f32.mrf.mxu0
        %697 = vdwg.mxu0
        %v698 = vpack.c.bf16 %v693, %v693
        %vm699 = vcmask 125952
        %700 = vst.msk [vmem:[#allocation3] sm:$0xf] %vm699, %v698
        %701 = vrot.lane.b32.xlu0 %v584, 112
        %v702 = vpop.permute.xlu0 %701
        %703 = vrot.lane.b32.xlu0 %v584, 80
        %v704 = vpop.permute.xlu0 %703
        %v706 = vsel %vm588, %v702, 0
        %v709 = vsel %vm588, %v704, 0
        %711 = vmatprep.subr.bf16.mxu0 0
        %712 = vmatpush1.bf16.xpose.msra.mxu0 0
        %713 = vmatprep.subr.bf16.mxu0 0
        %714 = vmatpush1.bf16.xpose.msra.mxu0 0
        %715 = vmatprep.subr.bf16.mxu0 0
        %716 = vmatpush1.bf16.xpose.msra.mxu0 0
        %717 = vmatprep.subr.bf16.mxu0 0
        %718 = vmatpush1.bf16.xpose.msra.mxu0 0
        %719 = vmatprep.subr.bf16.mxu0 0
        %720 = vmatpush1.bf16.xpose.msra.mxu0 0
        %721 = vmatprep.subr.bf16.mxu0 0
        %722 = vmatpush1.bf16.xpose.msra.mxu0 0
        %723 = vmatprep.subr.bf16.mxu0 0
        %724 = vmatpush1.bf16.xpose.msra.mxu0 0
        %725 = vmatprep.subr.bf16.mxu0 0
        %726 = vmatpush1.bf16.xpose.msra.mxu0 %v709
        %727 = vmatprep.subr.bf16.mxu0 0
        %728 = vmatpush2.bf16.xpose.msra.mxu0 0
        %729 = vmatprep.subr.bf16.mxu0 0
        %730 = vmatpush2.bf16.xpose.msra.mxu0 0
        %731 = vmatprep.subr.bf16.mxu0 0
        %732 = vmatpush2.bf16.xpose.msra.mxu0 0
        %733 = vmatprep.subr.bf16.mxu0 0
        %734 = vmatpush2.bf16.xpose.msra.mxu0 0
        %735 = vmatprep.subr.bf16.mxu0 0
        %736 = vmatpush2.bf16.xpose.msra.mxu0 0
        %737 = vmatprep.subr.bf16.mxu0 0
        %738 = vmatpush2.bf16.xpose.msra.mxu0 0
        %739 = vmatprep.subr.bf16.mxu0 0
        %740 = vmatpush2.bf16.xpose.msra.mxu0 0
        %741 = vmatprep.subr.bf16.mxu0 0
        %742 = vmatpush2.bf16.xpose.msra.mxu0 0
        %743 = vmatprep.mubr.bf16.mxu0 0
        %744 = vmatmul.mubr.bf16.gmra.mxu0 %v706
        %v745 = vpop.f32.mrf.mxu0
        %v746 = vadd.f32 0.0, %v745
        %v747 = vpop.f32.mrf.mxu0
        %v748 = vpop.f32.mrf.mxu0
        %v749 = vpop.f32.mrf.mxu0
        %750 = vdwg.mxu0
        %v751 = vmul.f32 %v746, 0.25
        %v752 = vsel %vm636, %v751, -inf
        %753 = vmax.xlane.f32.xlu0 %v752
        %v754 = vpop.xlane.xlu0 %753
        %v755 = vsub.f32 %v751, %v754
        %v756 = vmul.f32 %v755, 1.442695
        %v757 = vpow.pop %v756
        %v758 = vsel %vm636, %v757, 0.0
        %759 = vadd.xlane.f32.xlu0 %v758
        %v760 = vpop.xlane.xlu0 %759
        %v761 = vrcp.pop %v760
        %v762 = vmul.f32 %v757, %v761
        %v763 = vpack.c.bf16 %v762, %v762
        %764 = vrot.lane.b32.xlu0 %v584, 48
        %v765 = vpop.permute.xlu0 %764
        %v767 = vsel %vm636, %v763, 0
        %v770 = vsel %vm654, %v765, 0
        %772 = vmatprep.subr.bf16.mxu0 0
        %773 = vmatpush1.bf16.msra.mxu0 0
        %774 = vmatprep.subr.bf16.mxu0 0
        %775 = vmatpush1.bf16.msra.mxu0 0
        %776 = vmatprep.subr.bf16.mxu0 0
        %777 = vmatpush1.bf16.msra.mxu0 0
        %778 = vmatprep.subr.bf16.mxu0 0
        %779 = vmatpush1.bf16.msra.mxu0 0
        %780 = vmatprep.subr.bf16.mxu0 0
        %781 = vmatpush1.bf16.msra.mxu0 0
        %782 = vmatprep.subr.bf16.mxu0 0
        %783 = vmatpush1.bf16.msra.mxu0 0
        %784 = vmatprep.subr.bf16.mxu0 0
        %785 = vmatpush1.bf16.msra.mxu0 0
        %786 = vmatprep.subr.bf16.mxu0 0
        %787 = vmatpush1.bf16.msra.mxu0 %v770
        %788 = vmatprep.subr.bf16.mxu0 0
        %789 = vmatpush2.bf16.msra.mxu0 0
        %790 = vmatprep.subr.bf16.mxu0 0
        %791 = vmatpush2.bf16.msra.mxu0 0
        %792 = vmatprep.subr.bf16.mxu0 0
        %793 = vmatpush2.bf16.msra.mxu0 0
        %794 = vmatprep.subr.bf16.mxu0 0
        %795 = vmatpush2.bf16.msra.mxu0 0
        %796 = vmatprep.subr.bf16.mxu0 0
        %797 = vmatpush2.bf16.msra.mxu0 0
        %798 = vmatprep.subr.bf16.mxu0 0
        %799 = vmatpush2.bf16.msra.mxu0 0
        %800 = vmatprep.subr.bf16.mxu0 0
        %801 = vmatpush2.bf16.msra.mxu0 0
        %802 = vmatprep.subr.bf16.mxu0 0
        %803 = vmatpush2.bf16.msra.mxu0 0
        %804 = vmatprep.mubr.bf16.mxu0 0
        %805 = vmatmul.mubr.bf16.gmra.mxu0 %v767
        %v806 = vpop.f32.mrf.mxu0
        %v807 = vadd.f32 0.0, %v806
        %v808 = vpop.f32.mrf.mxu0
        %v809 = vpop.f32.mrf.mxu0
        %v810 = vpop.f32.mrf.mxu0
        %811 = vdwg.mxu0
        %v812 = vpack.c.bf16 %v807, %v807
        %v814 = vunpack.c.l.b16 %v812
        %v815 = vpack.c.b16 %v814, %v814
        %816 = vrot.lane.b32.xlu0 %v815, 16
        %v817 = vpop.permute.xlu0 %816
        %vm819 = vcmask 257152
        %820 = vst.msk [vmem:[#allocation3] sm:$0xf] %vm819, %v817
        %v821 = vrot.slane %v584, 4
        %822 = vrot.lane.b32.xlu0 %v821, 96
        %v823 = vpop.permute.xlu0 %822
        %v825 = vsel %vm588, %v821, 0
        %v828 = vsel %vm588, %v823, 0
        %830 = vmatprep.subr.bf16.mxu0 0
        %831 = vmatpush1.bf16.xpose.msra.mxu0 0
        %832 = vmatprep.subr.bf16.mxu0 0
        %833 = vmatpush1.bf16.xpose.msra.mxu0 0
        %834 = vmatprep.subr.bf16.mxu0 0
        %835 = vmatpush1.bf16.xpose.msra.mxu0 0
        %836 = vmatprep.subr.bf16.mxu0 0
        %837 = vmatpush1.bf16.xpose.msra.mxu0 0
        %838 = vmatprep.subr.bf16.mxu0 0
        %839 = vmatpush1.bf16.xpose.msra.mxu0 0
        %840 = vmatprep.subr.bf16.mxu0 0
        %841 = vmatpush1.bf16.xpose.msra.mxu0 0
        %842 = vmatprep.subr.bf16.mxu0 0
        %843 = vmatpush1.bf16.xpose.msra.mxu0 0
        %844 = vmatprep.subr.bf16.mxu0 0
        %845 = vmatpush1.bf16.xpose.msra.mxu0 %v828
        %846 = vmatprep.subr.bf16.mxu0 0
        %847 = vmatpush2.bf16.xpose.msra.mxu0 0
        %848 = vmatprep.subr.bf16.mxu0 0
        %849 = vmatpush2.bf16.xpose.msra.mxu0 0
        %850 = vmatprep.subr.bf16.mxu0 0
        %851 = vmatpush2.bf16.xpose.msra.mxu0 0
        %852 = vmatprep.subr.bf16.mxu0 0
        %853 = vmatpush2.bf16.xpose.msra.mxu0 0
        %854 = vmatprep.subr.bf16.mxu0 0
        %855 = vmatpush2.bf16.xpose.msra.mxu0 0
        %856 = vmatprep.subr.bf16.mxu0 0
        %857 = vmatpush2.bf16.xpose.msra.mxu0 0
        %858 = vmatprep.subr.bf16.mxu0 0
        %859 = vmatpush2.bf16.xpose.msra.mxu0 0
        %860 = vmatprep.subr.bf16.mxu0 0
        %861 = vmatpush2.bf16.xpose.msra.mxu0 0
        %862 = vmatprep.mubr.bf16.mxu0 0
        %863 = vmatmul.mubr.bf16.gmra.mxu0 %v825
        %v864 = vpop.f32.mrf.mxu0
        %v865 = vadd.f32 0.0, %v864
        %v866 = vpop.f32.mrf.mxu0
        %v867 = vpop.f32.mrf.mxu0
        %v868 = vpop.f32.mrf.mxu0
        %869 = vdwg.mxu0
        %v870 = vmul.f32 %v865, 0.25
        %v871 = vsel %vm636, %v870, -inf
        %872 = vmax.xlane.f32.xlu0 %v871
        %v873 = vpop.xlane.xlu0 %872
        %v874 = vsub.f32 %v870, %v873
        %v875 = vmul.f32 %v874, 1.442695
        %v876 = vpow.pop %v875
        %v877 = vsel %vm636, %v876, 0.0
        %878 = vadd.xlane.f32.xlu0 %v877
        %v879 = vpop.xlane.xlu0 %878
        %v880 = vrcp.pop %v879
        %v881 = vmul.f32 %v876, %v880
        %v882 = vpack.c.bf16 %v881, %v881
        %883 = vrot.lane.b32.xlu0 %v821, 64
        %v884 = vpop.permute.xlu0 %883
        %v886 = vsel %vm636, %v882, 0
        %v889 = vsel %vm654, %v884, 0
        %891 = vmatprep.subr.bf16.mxu0 0
        %892 = vmatpush1.bf16.msra.mxu0 0
        %893 = vmatprep.subr.bf16.mxu0 0
        %894 = vmatpush1.bf16.msra.mxu0 0
        %895 = vmatprep.subr.bf16.mxu0 0
        %896 = vmatpush1.bf16.msra.mxu0 0
        %897 = vmatprep.subr.bf16.mxu0 0
        %898 = vmatpush1.bf16.msra.mxu0 0
        %899 = vmatprep.subr.bf16.mxu0 0
        %900 = vmatpush1.bf16.msra.mxu0 0
        %901 = vmatprep.subr.bf16.mxu0 0
        %902 = vmatpush1.bf16.msra.mxu0 0
        %903 = vmatprep.subr.bf16.mxu0 0
        %904 = vmatpush1.bf16.msra.mxu0 0
        %905 = vmatprep.subr.bf16.mxu0 0
        %906 = vmatpush1.bf16.msra.mxu0 %v889
        %907 = vmatprep.subr.bf16.mxu0 0
        %908 = vmatpush2.bf16.msra.mxu0 0
        %909 = vmatprep.subr.bf16.mxu0 0
        %910 = vmatpush2.bf16.msra.mxu0 0
        %911 = vmatprep.subr.bf16.mxu0 0
        %912 = vmatpush2.bf16.msra.mxu0 0
        %913 = vmatprep.subr.bf16.mxu0 0
        %914 = vmatpush2.bf16.msra.mxu0 0
        %915 = vmatprep.subr.bf16.mxu0 0
        %916 = vmatpush2.bf16.msra.mxu0 0
        %917 = vmatprep.subr.bf16.mxu0 0
        %918 = vmatpush2.bf16.msra.mxu0 0
        %919 = vmatprep.subr.bf16.mxu0 0
        %920 = vmatpush2.bf16.msra.mxu0 0
        %921 = vmatprep.subr.bf16.mxu0 0
        %922 = vmatpush2.bf16.msra.mxu0 0
        %923 = vmatprep.mubr.bf16.mxu0 0
        %924 = vmatmul.mubr.bf16.gmra.mxu0 %v886
        %v925 = vpop.f32.mrf.mxu0
        %v926 = vadd.f32 0.0, %v925
        %v927 = vpop.f32.mrf.mxu0
        %v928 = vpop.f32.mrf.mxu0
        %v929 = vpop.f32.mrf.mxu0
        %930 = vdwg.mxu0
        %v931 = vpack.c.bf16 %v926, %v926
        %932 = vst.msk [vmem:[#allocation3 + $0x4] sm:$0xf] %vm699, %v931
        %933 = vrot.lane.b32.xlu0 %v821, 112
        %v934 = vpop.permute.xlu0 %933
        %935 = vrot.lane.b32.xlu0 %v821, 80
        %v936 = vpop.permute.xlu0 %935
        %v938 = vsel %vm588, %v934, 0
        %v941 = vsel %vm588, %v936, 0
        %943 = vmatprep.subr.bf16.mxu0 0
        %944 = vmatpush1.bf16.xpose.msra.mxu0 0
        %945 = vmatprep.subr.bf16.mxu0 0
        %946 = vmatpush1.bf16.xpose.msra.mxu0 0
        %947 = vmatprep.subr.bf16.mxu0 0
        %948 = vmatpush1.bf16.xpose.msra.mxu0 0
        %949 = vmatprep.subr.bf16.mxu0 0
        %950 = vmatpush1.bf16.xpose.msra.mxu0 0
        %951 = vmatprep.subr.bf16.mxu0 0
        %952 = vmatpush1.bf16.xpose.msra.mxu0 0
        %953 = vmatprep.subr.bf16.mxu0 0
        %954 = vmatpush1.bf16.xpose.msra.mxu0 0
        %955 = vmatprep.subr.bf16.mxu0 0
        %956 = vmatpush1.bf16.xpose.msra.mxu0 0
        %957 = vmatprep.subr.bf16.mxu0 0
        %958 = vmatpush1.bf16.xpose.msra.mxu0 %v941
        %959 = vmatprep.subr.bf16.mxu0 0
        %960 = vmatpush2.bf16.xpose.msra.mxu0 0
        %961 = vmatprep.subr.bf16.mxu0 0
        %962 = vmatpush2.bf16.xpose.msra.mxu0 0
        %963 = vmatprep.subr.bf16.mxu0 0
        %964 = vmatpush2.bf16.xpose.msra.mxu0 0
        %965 = vmatprep.subr.bf16.mxu0 0
        %966 = vmatpush2.bf16.xpose.msra.mxu0 0
        %967 = vmatprep.subr.bf16.mxu0 0
        %968 = vmatpush2.bf16.xpose.msra.mxu0 0
        %969 = vmatprep.subr.bf16.mxu0 0
        %970 = vmatpush2.bf16.xpose.msra.mxu0 0
        %971 = vmatprep.subr.bf16.mxu0 0
        %972 = vmatpush2.bf16.xpose.msra.mxu0 0
        %973 = vmatprep.subr.bf16.mxu0 0
        %974 = vmatpush2.bf16.xpose.msra.mxu0 0
        %975 = vmatprep.mubr.bf16.mxu0 0
        %976 = vmatmul.mubr.bf16.gmra.mxu0 %v938
        %v977 = vpop.f32.mrf.mxu0
        %v978 = vadd.f32 0.0, %v977
        %v979 = vpop.f32.mrf.mxu0
        %v980 = vpop.f32.mrf.mxu0
        %v981 = vpop.f32.mrf.mxu0
        %982 = vdwg.mxu0
        %v983 = vmul.f32 %v978, 0.25
        %v984 = vsel %vm636, %v983, -inf
        %985 = vmax.xlane.f32.xlu0 %v984
        %v986 = vpop.xlane.xlu0 %985
        %v987 = vsub.f32 %v983, %v986
        %v988 = vmul.f32 %v987, 1.442695
        %v989 = vpow.pop %v988
        %v990 = vsel %vm636, %v989, 0.0
        %991 = vadd.xlane.f32.xlu0 %v990
        %v992 = vpop.xlane.xlu0 %991
        %v993 = vrcp.pop %v992
        %v994 = vmul.f32 %v989, %v993
        %v995 = vpack.c.bf16 %v994, %v994
        %996 = vrot.lane.b32.xlu0 %v821, 48
        %v997 = vpop.permute.xlu0 %996
        %v999 = vsel %vm636, %v995, 0
        %v1002 = vsel %vm654, %v997, 0
        %1004 = vmatprep.subr.bf16.mxu0 0
        %1005 = vmatpush1.bf16.msra.mxu0 0
        %1006 = vmatprep.subr.bf16.mxu0 0
        %1007 = vmatpush1.bf16.msra.mxu0 0
        %1008 = vmatprep.subr.bf16.mxu0 0
        %1009 = vmatpush1.bf16.msra.mxu0 0
        %1010 = vmatprep.subr.bf16.mxu0 0
        %1011 = vmatpush1.bf16.msra.mxu0 0
        %1012 = vmatprep.subr.bf16.mxu0 0
        %1013 = vmatpush1.bf16.msra.mxu0 0
        %1014 = vmatprep.subr.bf16.mxu0 0
        %1015 = vmatpush1.bf16.msra.mxu0 0
        %1016 = vmatprep.subr.bf16.mxu0 0
        %1017 = vmatpush1.bf16.msra.mxu0 0
        %1018 = vmatprep.subr.bf16.mxu0 0
        %1019 = vmatpush1.bf16.msra.mxu0 %v1002
        %1020 = vmatprep.subr.bf16.mxu0 0
        %1021 = vmatpush2.bf16.msra.mxu0 0
        %1022 = vmatprep.subr.bf16.mxu0 0
        %1023 = vmatpush2.bf16.msra.mxu0 0
        %1024 = vmatprep.subr.bf16.mxu0 0
        %1025 = vmatpush2.bf16.msra.mxu0 0
        %1026 = vmatprep.subr.bf16.mxu0 0
        %1027 = vmatpush2.bf16.msra.mxu0 0
        %1028 = vmatprep.subr.bf16.mxu0 0
        %1029 = vmatpush2.bf16.msra.mxu0 0
        %1030 = vmatprep.subr.bf16.mxu0 0
        %1031 = vmatpush2.bf16.msra.mxu0 0
        %1032 = vmatprep.subr.bf16.mxu0 0
        %1033 = vmatpush2.bf16.msra.mxu0 0
        %1034 = vmatprep.subr.bf16.mxu0 0
        %1035 = vmatpush2.bf16.msra.mxu0 0
        %1036 = vmatprep.mubr.bf16.mxu0 0
        %1037 = vmatmul.mubr.bf16.gmra.mxu0 %v999
        %v1038 = vpop.f32.mrf.mxu0
        %v1039 = vadd.f32 0.0, %v1038
        %v1040 = vpop.f32.mrf.mxu0
        %v1041 = vpop.f32.mrf.mxu0
        %v1042 = vpop.f32.mrf.mxu0
        %1043 = vdwg.mxu0
        %v1044 = vpack.c.bf16 %v1039, %v1039
        %v1046 = vunpack.c.l.b16 %v1044
        %v1047 = vpack.c.b16 %v1046, %v1046
        %1048 = vrot.lane.b32.xlu0 %v1047, 16
        %v1049 = vpop.permute.xlu0 %1048
        %1051 = vst.msk [vmem:[#allocation3 + $0x4] sm:$0xf] %vm819, %v1049
        %v1052 = vld [vmem:[#allocation3] sm:$0xf]
        %v1053 = vld [vmem:[#allocation3 + $0x4] sm:$0xf]
        %v1054 = vld [vmem:[%s481] sm:$0xf]
        %v1055 = vld [vmem:[%s481 + $0x4] sm:$0xf]
        %v1056 = vld [vmem:[%s481 + $0x8] sm:$0xf]
        %v1057 = vld [vmem:[%s481 + $0xc] sm:$0xf]
        %v1058 = vlaneseq
        %v1059 = vshrl.u32 %v1058, 7
        %v1060 = vsub.s32 0, %v1059
        %v1061 = vrot.slane %v513, %v1060
        %v1064 = vunpack.c.l.b16 %v1052
        %v1065 = vunpack.c.l.b16 %v1053
        %v1066 = vpack.c.b16 %v1065, %v1064
        %v1071 = vunpack.c.l.b16 %v1054
        %v1072 = vunpack.c.l.b16 %v1055
        %v1073 = vunpack.c.l.b16 %v1056
        %v1074 = vunpack.c.l.b16 %v1057
        %v1075 = vpack.c.b16 %v1072, %v1071
        %v1076 = vpack.c.b16 %v1074, %v1073
        %v1080 = vsel %vm539, %v1066, 0
        %1082 = vmatprep.subr.bf16.mxu0 0
        %1083 = vmatpush1.bf16.msra.mxu0 0
        %1084 = vmatprep.subr.bf16.mxu0 0
        %1085 = vmatpush1.bf16.msra.mxu0 0
        %1086 = vmatprep.subr.bf16.mxu0 0
        %1087 = vmatpush1.bf16.msra.mxu0 0
        %1088 = vmatprep.subr.bf16.mxu0 0
        %1089 = vmatpush1.bf16.msra.mxu0 0
        %1090 = vmatprep.subr.bf16.mxu0 0
        %1091 = vmatpush1.bf16.msra.mxu0 0
        %1092 = vmatprep.subr.bf16.mxu0 0
        %1093 = vmatpush1.bf16.msra.mxu0 0
        %1094 = vmatprep.subr.bf16.mxu0 0
        %1095 = vmatpush1.bf16.msra.mxu0 %v1076
        %1096 = vmatprep.subr.bf16.mxu0 0
        %1097 = vmatpush1.bf16.msra.mxu0 %v1075
        %1098 = vmatprep.subr.bf16.mxu0 0
        %1099 = vmatpush2.bf16.msra.mxu0 0
        %1100 = vmatprep.subr.bf16.mxu0 0
        %1101 = vmatpush2.bf16.msra.mxu0 0
        %1102 = vmatprep.subr.bf16.mxu0 0
        %1103 = vmatpush2.bf16.msra.mxu0 0
        %1104 = vmatprep.subr.bf16.mxu0 0
        %1105 = vmatpush2.bf16.msra.mxu0 0
        %1106 = vmatprep.subr.bf16.mxu0 0
        %1107 = vmatpush2.bf16.msra.mxu0 0
        %1108 = vmatprep.subr.bf16.mxu0 0
        %1109 = vmatpush2.bf16.msra.mxu0 0
        %1110 = vmatprep.subr.bf16.mxu0 0
        %1111 = vmatpush2.bf16.msra.mxu0 0
        %1112 = vmatprep.subr.bf16.mxu0 0
        %1113 = vmatpush2.bf16.msra.mxu0 0
        %1114 = vmatprep.mubr.bf16.mxu0 0
        %1115 = vmatmul.mubr.bf16.gmra.mxu0 %v1080
        %v1116 = vpop.f32.mrf.mxu0
        %v1117 = vadd.f32 %v1061, %v1116
        %v1118 = vpop.f32.mrf.mxu0
        %v1119 = vpop.f32.mrf.mxu0
        %v1120 = vadd.f32 %v1061, %v1119
        %v1121 = vpop.f32.mrf.mxu0
        %1122 = vdwg.mxu0
        %v1123 = vadd.f32 %v511, %v1117
        %v1124 = vadd.f32 %v512, %v1120
        %v1125 = vsel %vm539, %v1123, 0.0
        %1126 = vadd.xlane.f32.xlu0 %v1125
        %v1127 = vpop.xlane.xlu0 %1126
        %v1128 = vsel %vm539, %v1124, 0.0
        %1129 = vadd.xlane.f32.xlu0 %v1128
        %v1130 = vpop.xlane.xlu0 %1129
        %v1131 = vrcp.pop 32.0
        %v1132 = vmul.f32 %v1127, %v1131
        %v1133 = vmul.f32 %v1130, %v1131
        %v1134 = vsub.f32 %v1123, %v1132
        %v1135 = vsub.f32 %v1124, %v1133
        %v1136 = vmul.f32 %v1134, %v1134
        %v1137 = vmul.f32 %v1135, %v1135
        %v1138 = vsel %vm539, %v1136, 0.0
        %1139 = vadd.xlane.f32.xlu0 %v1138
        %v1140 = vpop.xlane.xlu0 %1139
        %v1141 = vsel %vm539, %v1137, 0.0
        %1142 = vadd.xlane.f32.xlu0 %v1141
        %v1143 = vpop.xlane.xlu0 %1142
        %v1144 = vmul.f32 %v1140, %v1131
        %v1145 = vmul.f32 %v1143, %v1131
        %v1146 = vadd.f32 %v1144, 1e-05
        %v1147 = vadd.f32 %v1145, 1e-05
        %v1148 = vrsqrt.pop %v1146
        %v1149 = vrsqrt.pop %v1147
        %v1150 = vmul.f32 %v1134, %v1148
        %v1151 = vmul.f32 %v1135, %v1149
        %v1152 = vlaneseq
        %v1153 = vshrl.u32 %v1152, 7
        %v1154 = vsub.s32 2, %v1153
        %v1155 = vrot.slane %v513, %v1154
        %v1156 = vmul.f32 %v1150, %v1155
        %v1157 = vmul.f32 %v1151, %v1155
        %v1158 = vlaneseq
        %v1159 = vshrl.u32 %v1158, 7
        %v1160 = vsub.s32 3, %v1159
        %v1161 = vrot.slane %v513, %v1160
        %v1162 = vadd.f32 %v1156, %v1161
        %v1163 = vadd.f32 %v1157, %v1161
        %v1164 = vlaneseq
        %v1165 = vshrl.u32 %v1164, 7
        %v1166 = vsub.s32 1, %v1165
        %v1167 = vrot.slane %v513, %v1166
        %v1168 = vadd.f32 %v1162, %v1167
        %v1169 = vadd.f32 %v1163, %v1167
        %v1170 = vsel %vm539, %v1168, 0.0
        %1171 = vadd.xlane.f32.xlu0 %v1170
        %v1172 = vpop.xlane.xlu0 %1171
        %v1173 = vsel %vm539, %v1169, 0.0
        %1174 = vadd.xlane.f32.xlu0 %v1173
        %v1175 = vpop.xlane.xlu0 %1174
        %v1176 = vmul.f32 %v1172, %v1131
        %v1177 = vmul.f32 %v1175, %v1131
        %v1178 = vsub.f32 %v1168, %v1176
        %v1179 = vsub.f32 %v1169, %v1177
        %v1180 = vmul.f32 %v1178, %v1178
        %v1181 = vmul.f32 %v1179, %v1179
        %v1182 = vsel %vm539, %v1180, 0.0
        %1183 = vadd.xlane.f32.xlu0 %v1182
        %v1184 = vpop.xlane.xlu0 %1183
        %v1185 = vsel %vm539, %v1181, 0.0
        %1186 = vadd.xlane.f32.xlu0 %v1185
        %v1187 = vpop.xlane.xlu0 %1186
        %v1188 = vmul.f32 %v1184, %v1131
        %v1189 = vmul.f32 %v1187, %v1131
        %v1190 = vadd.f32 %v1188, 1e-05
        %v1191 = vadd.f32 %v1189, 1e-05
        %v1192 = vrsqrt.pop %v1190
        %v1193 = vrsqrt.pop %v1191
        %v1194 = vmul.f32 %v1178, %v1192
        %v1195 = vmul.f32 %v1179, %v1193
        %v1196 = vlaneseq
        %v1197 = vshrl.u32 %v1196, 7
        %v1198 = vsub.s32 4, %v1197
        %v1199 = vrot.slane %v513, %v1198
        %v1200 = vmul.f32 %v1194, %v1199
        %v1201 = vmul.f32 %v1195, %v1199
        %v1202 = vlaneseq
        %v1203 = vshrl.u32 %v1202, 7
        %v1204 = vsub.s32 5, %v1203
        %v1205 = vrot.slane %v513, %v1204
        %v1206 = vadd.f32 %v1200, %v1205
        %v1207 = vadd.f32 %v1201, %v1205
        %v1208 = vpack.c.bf16 %v1207, %v1206
        %v1209 = vld [vmem:[%s486] sm:$0xf]
        %v1210 = vld [vmem:[%s486 + $0x4] sm:$0xf]
        %v1211 = vld [vmem:[%s486 + $0x8] sm:$0xf]
        %v1212 = vld [vmem:[%s486 + $0xc] sm:$0xf]
        %v1213 = vld [vmem:[%s489] sm:$0x1]
        %v1215 = vlaneseq
        %v1216 = vshrl.u32 %v1215, 7
        %v1217 = vsub.s32 0, %v1216
        %v1218 = vrot.slane %v1213, %v1217
        %v1224 = vunpack.c.l.b16 %v1209
        %v1225 = vunpack.c.l.b16 %v1210
        %v1226 = vunpack.c.l.b16 %v1211
        %v1227 = vunpack.c.l.b16 %v1212
        %v1228 = vpack.c.b16 %v1225, %v1224
        %v1229 = vpack.c.b16 %v1227, %v1226
        %v1233 = vsel %vm539, %v1208, 0
        %1235 = vmatprep.subr.bf16.mxu0 0
        %1236 = vmatpush1.bf16.msra.mxu0 0
        %1237 = vmatprep.subr.bf16.mxu0 0
        %1238 = vmatpush1.bf16.msra.mxu0 0
        %1239 = vmatprep.subr.bf16.mxu0 0
        %1240 = vmatpush1.bf16.msra.mxu0 0
        %1241 = vmatprep.subr.bf16.mxu0 0
        %1242 = vmatpush1.bf16.msra.mxu0 0
        %1243 = vmatprep.subr.bf16.mxu0 0
        %1244 = vmatpush1.bf16.msra.mxu0 0
        %1245 = vmatprep.subr.bf16.mxu0 0
        %1246 = vmatpush1.bf16.msra.mxu0 0
        %1247 = vmatprep.subr.bf16.mxu0 0
        %1248 = vmatpush1.bf16.msra.mxu0 %v1229
        %1249 = vmatprep.subr.bf16.mxu0 0
        %1250 = vmatpush1.bf16.msra.mxu0 %v1228
        %1251 = vmatprep.subr.bf16.mxu0 0
        %1252 = vmatpush2.bf16.msra.mxu0 0
        %1253 = vmatprep.subr.bf16.mxu0 0
        %1254 = vmatpush2.bf16.msra.mxu0 0
        %1255 = vmatprep.subr.bf16.mxu0 0
        %1256 = vmatpush2.bf16.msra.mxu0 0
        %1257 = vmatprep.subr.bf16.mxu0 0
        %1258 = vmatpush2.bf16.msra.mxu0 0
        %1259 = vmatprep.subr.bf16.mxu0 0
        %1260 = vmatpush2.bf16.msra.mxu0 0
        %1261 = vmatprep.subr.bf16.mxu0 0
        %1262 = vmatpush2.bf16.msra.mxu0 0
        %1263 = vmatprep.subr.bf16.mxu0 0
        %1264 = vmatpush2.bf16.msra.mxu0 0
        %1265 = vmatprep.subr.bf16.mxu0 0
        %1266 = vmatpush2.bf16.msra.mxu0 0
        %1267 = vmatprep.mubr.bf16.mxu0 0
        %1268 = vmatmul.mubr.bf16.gmra.mxu0 %v1233
        %v1269 = vpop.f32.mrf.mxu0
        %v1270 = vadd.f32 %v1218, %v1269
        %v1271 = vpop.f32.mrf.mxu0
        %v1272 = vpop.f32.mrf.mxu0
        %v1273 = vadd.f32 %v1218, %v1272
        %v1274 = vpop.f32.mrf.mxu0
        %1275 = vdwg.mxu0
        %v1276 = vmul.f32 %v1270, 0.5
        %v1277 = vmul.f32 %v1273, 0.5
        %v1278 = vmul.f32 %v1270, 0.70710677
        %v1279 = vmul.f32 %v1273, 0.70710677
        %vm1280 = vcmp.ge.f32.partialorder %v1278, 0.0
        %vm1281 = vcmp.ge.f32.partialorder %v1279, 0.0
        %v1282 = vsub.f32 0.0, %v1278
        %v1283 = vsub.f32 0.0, %v1279
        %v1284 = vsel %vm1280, %v1278, %v1282
        %v1285 = vsel %vm1281, %v1279, %v1283
        %v1286 = vmul.f32 %v1284, 0.3275911
        %v1287 = vmul.f32 %v1285, 0.3275911
        %v1288 = vadd.f32 %v1286, 1.0
        %v1289 = vadd.f32 %v1287, 1.0
        %v1290 = vrcp.pop %v1288
        %v1291 = vmul.f32 1.0, %v1290
        %v1292 = vrcp.pop %v1289
        %v1293 = vmul.f32 1.0, %v1292
        %v1294 = vmul.f32 %v1291, 1.0614054
        %v1295 = vmul.f32 %v1293, 1.0614054
        %v1296 = vadd.f32 %v1294, -1.4531521
        %v1297 = vadd.f32 %v1295, -1.4531521
        %v1298 = vmul.f32 %v1296, %v1291
        %v1299 = vmul.f32 %v1297, %v1293
        %v1300 = vadd.f32 %v1298, 1.4214138
        %v1301 = vadd.f32 %v1299, 1.4214138
        %v1302 = vmul.f32 %v1300, %v1291
        %v1303 = vmul.f32 %v1301, %v1293
        %v1304 = vadd.f32 %v1302, -0.28449672
        %v1305 = vadd.f32 %v1303, -0.28449672
        %v1306 = vmul.f32 %v1304, %v1291
        %v1307 = vmul.f32 %v1305, %v1293
        %v1308 = vadd.f32 %v1306, 0.2548296
        %v1309 = vadd.f32 %v1307, 0.2548296
        %v1310 = vmul.f32 %v1308, %v1291
        %v1311 = vmul.f32 %v1309, %v1293
        %v1312 = vsub.f32 0.0, %v1284
        %v1313 = vsub.f32 0.0, %v1285
        %v1314 = vmul.f32 %v1312, %v1284
        %v1315 = vmul.f32 %v1313, %v1285
        %v1316 = vmul.f32 %v1314, 1.442695
        %v1317 = vpow.pop %v1316
        %v1318 = vmul.f32 %v1315, 1.442695
        %v1319 = vpow.pop %v1318
        %v1320 = vmul.f32 %v1310, %v1317
        %v1321 = vmul.f32 %v1311, %v1319
        %v1322 = vsub.f32 1.0, %v1320
        %v1323 = vsub.f32 1.0, %v1321
        %v1324 = vsub.f32 0.0, %v1322
        %v1325 = vsub.f32 0.0, %v1323
        %v1326 = vsel %vm1280, %v1322, %v1324
        %v1327 = vsel %vm1281, %v1323, %v1325
        %v1328 = vadd.f32 %v1326, 1.0
        %v1329 = vadd.f32 %v1327, 1.0
        %v1330 = vmul.f32 %v1276, %v1328
        %v1331 = vmul.f32 %v1277, %v1329
        %v1332 = vpack.c.bf16 %v1331, %v1330
        %v1333 = vld [vmem:[%s494] sm:$0xf]
        %v1334 = vld [vmem:[%s494 + $0x4] sm:$0xf]
        %v1335 = vld [vmem:[%s494 + $0x8] sm:$0xf]
        %v1336 = vld [vmem:[%s494 + $0xc] sm:$0xf]
        %v1337 = vld [vmem:[%s494 + $0x10] sm:$0xf]
        %v1338 = vld [vmem:[%s494 + $0x14] sm:$0xf]
        %v1339 = vld [vmem:[%s494 + $0x18] sm:$0xf]
        %v1340 = vld [vmem:[%s494 + $0x1c] sm:$0xf]
        %v1341 = vlaneseq
        %v1342 = vshrl.u32 %v1341, 7
        %v1343 = vsub.s32 0, %v1342
        %v1344 = vrot.slane %v514, %v1343
        %v1353 = vunpack.c.l.b16 %v1333
        %v1354 = vunpack.c.l.b16 %v1334
        %v1355 = vunpack.c.l.b16 %v1335
        %v1356 = vunpack.c.l.b16 %v1336
        %v1357 = vunpack.c.l.b16 %v1337
        %v1358 = vunpack.c.l.b16 %v1338
        %v1359 = vunpack.c.l.b16 %v1339
        %v1360 = vunpack.c.l.b16 %v1340
        %v1361 = vpack.c.b16 %v1354, %v1353
        %v1362 = vpack.c.b16 %v1356, %v1355
        %v1363 = vpack.c.b16 %v1358, %v1357
        %v1364 = vpack.c.b16 %v1360, %v1359
        %vm1369 = vcmask 523264
        %v1371 = vsel %vm1369, %v1332, 0
        %1373 = vmatprep.subr.bf16.mxu0 0
        %1374 = vmatpush1.bf16.msra.mxu0 0
        %1375 = vmatprep.subr.bf16.mxu0 0
        %1376 = vmatpush1.bf16.msra.mxu0 0
        %1377 = vmatprep.subr.bf16.mxu0 0
        %1378 = vmatpush1.bf16.msra.mxu0 0
        %1379 = vmatprep.subr.bf16.mxu0 0
        %1380 = vmatpush1.bf16.msra.mxu0 0
        %1381 = vmatprep.subr.bf16.mxu0 0
        %1382 = vmatpush1.bf16.msra.mxu0 %v1364
        %1383 = vmatprep.subr.bf16.mxu0 0
        %1384 = vmatpush1.bf16.msra.mxu0 %v1363
        %1385 = vmatprep.subr.bf16.mxu0 0
        %1386 = vmatpush1.bf16.msra.mxu0 %v1362
        %1387 = vmatprep.subr.bf16.mxu0 0
        %1388 = vmatpush1.bf16.msra.mxu0 %v1361
        %1389 = vmatprep.subr.bf16.mxu0 0
        %1390 = vmatpush2.bf16.msra.mxu0 0
        %1391 = vmatprep.subr.bf16.mxu0 0
        %1392 = vmatpush2.bf16.msra.mxu0 0
        %1393 = vmatprep.subr.bf16.mxu0 0
        %1394 = vmatpush2.bf16.msra.mxu0 0
        %1395 = vmatprep.subr.bf16.mxu0 0
        %1396 = vmatpush2.bf16.msra.mxu0 0
        %1397 = vmatprep.subr.bf16.mxu0 0
        %1398 = vmatpush2.bf16.msra.mxu0 0
        %1399 = vmatprep.subr.bf16.mxu0 0
        %1400 = vmatpush2.bf16.msra.mxu0 0
        %1401 = vmatprep.subr.bf16.mxu0 0
        %1402 = vmatpush2.bf16.msra.mxu0 0
        %1403 = vmatprep.subr.bf16.mxu0 0
        %1404 = vmatpush2.bf16.msra.mxu0 0
        %1405 = vmatprep.mubr.bf16.mxu0 0
        %1406 = vmatmul.mubr.bf16.gmra.mxu0 %v1371
        %v1407 = vpop.f32.mrf.mxu0
        %v1408 = vadd.f32 %v1344, %v1407
        %v1409 = vpop.f32.mrf.mxu0
        %v1410 = vpop.f32.mrf.mxu0
        %v1411 = vadd.f32 %v1344, %v1410
        %v1412 = vpop.f32.mrf.mxu0
        %1413 = vdwg.mxu0
        %v1414 = vadd.f32 %v1206, %v1408
        %v1415 = vadd.f32 %v1207, %v1411
        %v1416 = vsel %vm539, %v1414, 0.0
        %1417 = vadd.xlane.f32.xlu0 %v1416
        %v1418 = vpop.xlane.xlu0 %1417
        %v1419 = vsel %vm539, %v1415, 0.0
        %1420 = vadd.xlane.f32.xlu0 %v1419
        %v1421 = vpop.xlane.xlu0 %1420
        %v1422 = vmul.f32 %v1418, %v1131
        %v1423 = vmul.f32 %v1421, %v1131
        %v1424 = vsub.f32 %v1414, %v1422
        %v1425 = vsub.f32 %v1415, %v1423
        %v1426 = vmul.f32 %v1424, %v1424
        %v1427 = vmul.f32 %v1425, %v1425
        %v1428 = vsel %vm539, %v1426, 0.0
        %1429 = vadd.xlane.f32.xlu0 %v1428
        %v1430 = vpop.xlane.xlu0 %1429
        %v1431 = vsel %vm539, %v1427, 0.0
        %1432 = vadd.xlane.f32.xlu0 %v1431
        %v1433 = vpop.xlane.xlu0 %1432
        %v1434 = vmul.f32 %v1430, %v1131
        %v1435 = vmul.f32 %v1433, %v1131
        %v1436 = vadd.f32 %v1434, 1e-05
        %v1437 = vadd.f32 %v1435, 1e-05
        %v1438 = vrsqrt.pop %v1436
        %v1439 = vrsqrt.pop %v1437
        %v1440 = vmul.f32 %v1424, %v1438
        %v1441 = vmul.f32 %v1425, %v1439
        %v1442 = vlaneseq
        %v1443 = vshrl.u32 %v1442, 7
        %v1444 = vsub.s32 6, %v1443
        %v1445 = vrot.slane %v513, %v1444
        %v1446 = vmul.f32 %v1440, %v1445
        %v1447 = vmul.f32 %v1441, %v1445
        %v1448 = vlaneseq
        %v1449 = vshrl.u32 %v1448, 7
        %v1450 = vsub.s32 7, %v1449
        %v1451 = vrot.slane %v513, %v1450
        %v1452 = vadd.f32 %v1446, %v1451
        %v1453 = vadd.f32 %v1447, %v1451
        %1454 = vst.msk [vmem:[#allocation2] sm:$0xff] %vm539, %v1452
        %1455 = vst.msk [vmem:[#allocation2 + $0x8] sm:$0xff] %vm539, %v1453
        %p1456 = scmp.eq.s32.totalorder %s29, 1
        // Predicated region
        $region65: #{_lambda_.1} parent=59 // pred_check
          %p1457 = pneg %p1456
        $region66: #{_lambda_.1} parent=59 // pred_check_branch
          %1459 = sbr.rel (%p1457) target = $region68
        $region67: #{_lambda_.1} parent=59 // pred_region
          %v1460 = vld [vmem:[%s8] sm:$0x1]
          %v1461 = vld [vmem:[%s8 + $0x1] sm:$0x1]
          %v1462 = vsel %vm539, %v1452, 0.0
          %1463 = vadd.xlane.f32.xlu0 %v1462
          %v1464 = vpop.xlane.xlu0 %1463
          %v1465 = vsel %vm539, %v1453, 0.0
          %1466 = vadd.xlane.f32.xlu0 %v1465
          %v1467 = vpop.xlane.xlu0 %1466
          %v1468 = vmul.f32 %v1464, %v1131
          %v1469 = vmul.f32 %v1467, %v1131
          %v1470 = vsub.f32 %v1452, %v1468
          %v1471 = vsub.f32 %v1453, %v1469
          %v1472 = vmul.f32 %v1470, %v1470
          %v1473 = vmul.f32 %v1471, %v1471
          %v1474 = vsel %vm539, %v1472, 0.0
          %1475 = vadd.xlane.f32.xlu0 %v1474
          %v1476 = vpop.xlane.xlu0 %1475
          %v1477 = vsel %vm539, %v1473, 0.0
          %1478 = vadd.xlane.f32.xlu0 %v1477
          %v1479 = vpop.xlane.xlu0 %1478
          %v1480 = vmul.f32 %v1476, %v1131
          %v1481 = vmul.f32 %v1479, %v1131
          %v1482 = vadd.f32 %v1480, 1e-05
          %v1483 = vadd.f32 %v1481, 1e-05
          %v1484 = vrsqrt.pop %v1482
          %v1485 = vrsqrt.pop %v1483
          %v1486 = vmul.f32 %v1470, %v1484
          %v1487 = vmul.f32 %v1471, %v1485
          %v1488 = vlaneseq
          %v1489 = vshrl.u32 %v1488, 7
          %v1490 = vsub.s32 0, %v1489
          %v1491 = vrot.slane %v1460, %v1490
          %v1492 = vmul.f32 %v1486, %v1491
          %v1493 = vmul.f32 %v1487, %v1491
          %v1494 = vlaneseq
          %v1495 = vshrl.u32 %v1494, 7
          %v1496 = vsub.s32 0, %v1495
          %v1497 = vrot.slane %v1461, %v1496
          %v1498 = vadd.f32 %v1492, %v1497
          %v1499 = vadd.f32 %v1493, %v1497
          %v1500 = vpack.c.bf16 %v1499, %v1498
          %v1501 = vld [vmem:[%s9] sm:$0xf]
          %v1502 = vld [vmem:[%s9 + $0x4] sm:$0xf]
          %v1503 = vld [vmem:[%s9 + $0x8] sm:$0xf]
          %v1504 = vld [vmem:[%s9 + $0xc] sm:$0xf]
          %v1509 = vunpack.c.l.b16 %v1501
          %v1510 = vunpack.c.l.b16 %v1502
          %v1511 = vunpack.c.l.b16 %v1503
          %v1512 = vunpack.c.l.b16 %v1504
          %v1513 = vpack.c.b16 %v1510, %v1509
          %v1514 = vpack.c.b16 %v1512, %v1511
          %v1518 = vsel %vm539, %v1500, 0
          %1520 = vmatprep.subr.bf16.mxu0 0
          %1521 = vmatpush1.bf16.msra.mxu0 0
          %1522 = vmatprep.subr.bf16.mxu0 0
          %1523 = vmatpush1.bf16.msra.mxu0 0
          %1524 = vmatprep.subr.bf16.mxu0 0
          %1525 = vmatpush1.bf16.msra.mxu0 0
          %1526 = vmatprep.subr.bf16.mxu0 0
          %1527 = vmatpush1.bf16.msra.mxu0 0
          %1528 = vmatprep.subr.bf16.mxu0 0
          %1529 = vmatpush1.bf16.msra.mxu0 0
          %1530 = vmatprep.subr.bf16.mxu0 0
          %1531 = vmatpush1.bf16.msra.mxu0 0
          %1532 = vmatprep.subr.bf16.mxu0 0
          %1533 = vmatpush1.bf16.msra.mxu0 %v1514
          %1534 = vmatprep.subr.bf16.mxu0 0
          %1535 = vmatpush1.bf16.msra.mxu0 %v1513
          %1536 = vmatprep.subr.bf16.mxu0 0
          %1537 = vmatpush2.bf16.msra.mxu0 0
          %1538 = vmatprep.subr.bf16.mxu0 0
          %1539 = vmatpush2.bf16.msra.mxu0 0
          %1540 = vmatprep.subr.bf16.mxu0 0
          %1541 = vmatpush2.bf16.msra.mxu0 0
          %1542 = vmatprep.subr.bf16.mxu0 0
          %1543 = vmatpush2.bf16.msra.mxu0 0
          %1544 = vmatprep.subr.bf16.mxu0 0
          %1545 = vmatpush2.bf16.msra.mxu0 0
          %1546 = vmatprep.subr.bf16.mxu0 0
          %1547 = vmatpush2.bf16.msra.mxu0 0
          %1548 = vmatprep.subr.bf16.mxu0 0
          %1549 = vmatpush2.bf16.msra.mxu0 0
          %1550 = vmatprep.subr.bf16.mxu0 0
          %1551 = vmatpush2.bf16.msra.mxu0 0
          %1552 = vmatprep.mubr.bf16.mxu0 0
          %1553 = vmatmul.mubr.bf16.gmra.mxu0 %v1518
          %v1554 = vpop.f32.mrf.mxu0
          %v1555 = vadd.f32 0.0, %v1554
          %v1556 = vpop.f32.mrf.mxu0
          %v1557 = vpop.f32.mrf.mxu0
          %v1558 = vadd.f32 0.0, %v1557
          %v1559 = vpop.f32.mrf.mxu0
          %1560 = vdwg.mxu0
          %1561 = vst [vmem:[%s462] sm:$0xff] %v1555
          %1562 = vst [vmem:[%s462 + $0x8] sm:$0xff] %v1558
        $region68: #{_lambda_.1} parent=59 // pred_fallthru
          _
        %s1563 = sand.u32 %s294, 1
        %s1564 = scalar_lea.sflag [#allocation5], %s1563
        %s1565 = sand.u32 %s294, 1
        %s1566 = smul.addr %s1565, 16
        %s1567 = scalar_lea.vmem [#allocation4], %s1566
        // Predicated region
        $region69: #{_lambda_.1} parent=59 // pred_check
          %p1568 = pneg %p304
        $region70: #{_lambda_.1} parent=59 // pred_check_branch
          %1570 = sbr.rel (%p1568) target = $region72
        $region71: #{_lambda_.1} parent=59 // pred_region
          %s1571 = smul.u32 2, %s28
          %s1573 = ssub.s32 256, 256
          %1574 = vsyncadd %s1564, %s1573
          %s1575 = smul.addr %s1571, 128
          %s1576 = scalar_lea.hbm %s10, %s1575
          %s1577 = sshll.u32 %s1567, 4
          %s1578 = int_to_ptr.vmem [resolvable:$true] %s1577
          %1583 = dma.vmem_to_hbm [thread:$0]  %s1578, 256, %s1576, %s1564, 128, 128, 8
        $region72: #{_lambda_.1} parent=59 // pred_fallthru
          _
      $region60: #{_lambda_.1} parent=5 // pred_fallthru
        _
      %p1584 = scmp.le.s32.totalorder 2, %s19
      // Predicated region
      $region73: #{_lambda_.1} parent=5 // pred_check
        %p1585 = pneg %p1584
      $region74: #{_lambda_.1} parent=5 // pred_check_branch
        %1587 = sbr.rel (%p1585) target = $region76
      $region75: #{_lambda_.1} parent=5 // pred_region
        %s1588 = ssub.s32 %s19, 2
        // Predicated region
        $region77: #{_lambda_.1} parent=75 // pred_check
          %p1589 = pneg %p310
        $region78: #{_lambda_.1} parent=75 // pred_check_branch
          %1591 = sbr.rel (%p1589) target = $region80
        $region79: #{_lambda_.1} parent=75 // pred_region
          %s1592 = sand.u32 %s295, 1
          %s1593 = scalar_lea.sflag [#allocation5], %s1592
          %s1594 = sand.u32 %s295, 1
          %s1595 = smul.addr %s1594, 16
          %s1596 = scalar_lea.vmem [#allocation4], %s1595
          %1597 = dma.done %s1593, 256
        $region80: #{_lambda_.1} parent=75 // pred_fallthru
          _
      $region76: #{_lambda_.1} parent=5 // pred_fallthru
        _
    $region6: #{_lambda_.1} parent=1 // loop_footer
      %s23 = sadd.s32 1, %s19
    $region7: #{_lambda_.1} parent=1 // loop_footer_branch
      %18 = sbr.rel target = $region3
    $region8: #{_lambda_.1} parent=1 // loop_exit
      _
    %1598 = vsyncpa [#allocation5], 1
    %s1599 = scalar_lea.sflag [#allocation5], 1
    %1600 = vsyncpa %s1599, 1

</llo_original>
